<compile_context>
chip_gen: v6e
topology: v6e:2x2x1
jax: 0.10.0
libtpu: 0.0.40
codegen_flags: <defaults>
</compile_context>

<pallas_src>
import math

import jax
import jax.numpy as jnp
from jax.experimental import pallas as pl
from jax.experimental.pallas import tpu as pltpu

DT = 0.005            # hard-coded dt in the torch module
SUB, LANE = 8, 128    # one (8,128) f32 vreg per scalar quantity
TILE = SUB * LANE     # filters handled per grid step (SoA batch block)


# --------------------------------------------------------------------------
# Trace-time small-matrix algebra: matrices are Python lists whose entries are
# either Python floats (compile-time constants; exact 0/1 are folded away) or
# (SUB, LANE) jnp arrays holding one value per batched filter.
# --------------------------------------------------------------------------
def _is_const(v):
    return isinstance(v, (int, float))


def _mul(a, b):
    if _is_const(a):
        if a == 0.0:
            return 0.0
        if a == 1.0:
            return b
        if _is_const(b):
            return float(a) * float(b)
    if _is_const(b):
        if b == 0.0:
            return 0.0
        if b == 1.0:
            return a
    return a * b


def _add(a, b):
    if _is_const(a) and a == 0.0:
        return b
    if _is_const(b) and b == 0.0:
        return a
    if _is_const(a) and _is_const(b):
        return float(a) + float(b)
    return a + b


def _sub(a, b):
    if _is_const(b) and b == 0.0:
        return a
    if _is_const(a) and _is_const(b):
        return float(a) - float(b)
    if _is_const(a) and a == 0.0:
        return -b
    return a - b


def _mm(A, B):
    m, k, n = len(A), len(B), len(B[0])
    out = []
    for i in range(m):
        row = []
        for j in range(n):
            acc = 0.0
            for l in range(k):
                acc = _add(acc, _mul(A[i][l], B[l][j]))
            row.append(acc)
        out.append(row)
    return out


def _madd(A, B):
    return [[_add(a, b) for a, b in zip(ra, rb)] for ra, rb in zip(A, B)]


def _msub(A, B):
    return [[_sub(a, b) for a, b in zip(ra, rb)] for ra, rb in zip(A, B)]


def _t(A):
    return [list(r) for r in zip(*A)]


# --------------------------------------------------------------------------
# Module constants (depend only on the module's constant state buffer and dt),
# computed once at trace time as Python floats.
# --------------------------------------------------------------------------
def _constants(dt, x0=(1.0, 0.0, 0.0, 0.0)):
    qw, qx, qy, qz = (float(v) for v in x0)
    a = 1.0 + (2.0 * (qw * qy + qx * qz)) ** 2
    b = 1.0 - (2.0 * (qy * qy + qz * qz)) ** 2
    c = 1.0 + (2.0 * (qw * qx + qy * qz)) ** 2
    d = 1.0 - (2.0 * (qx * qx + qz * qz)) ** 2
    H = [[2.0 * qy / a, 2.0 * qz / a, 2.0 * qw / b, 2.0 * qx / b],
         [2.0 * qx / c, 2.0 * qw / d, 2.0 * qz / c, 2.0 * qy / d]]

    # predict_x(): x_upd = x + 0.5*x, normalized (f() ignores the control input).
    xu = [1.5 * v for v in (qw, qx, qy, qz)]
    n = math.sqrt(sum(v * v for v in xu))
    xp = [v / n for v in xu]

    # TODO(synk): atan2 has no Mosaic primitive; Hx is evaluated at trace time,
    # which is exact here because the module's linearization state is a constant
    # buffer.  A time-recurrent in-kernel variant would need an atan2 approx.
    pw, px, py, pz = xp
    theta = math.atan2(2.0 * (pw * py + px * pz), 1.0 - 2.0 * (py * py + pz * pz))
    phi = math.atan2(2.0 * (pw * px + py * pz), 1.0 - 2.0 * (px * px + pz * pz))
    hx = [theta, phi]

    p = 0.0174 * dt * dt
    q = 0.0174 * dt * dt
    r = 1.0 * dt * dt
    P0 = [[p if i == j else 0.0 for j in range(4)] for i in range(4)]
    Q = [[q if i == j else 0.0 for j in range(4)] for i in range(4)]
    R = [[r if i == j else 0.0 for j in range(2)] for i in range(2)]
    return H, P0, Q, R, xp, hx


# --------------------------------------------------------------------------
# Kernel: one block of TILE filters, all math elementwise over (8,128) vregs.
# in_ref:  (5, 8, 128)  channels = [u0, u1, u2, z0, z1]
# out_ref: (20, 8, 128) channels = [P_post row-major (16), x_post (4)]
# --------------------------------------------------------------------------
def _make_kernel(dt):
    Hc, P0c, Qc, Rc, xp_c, hx_c = _constants(dt)
    half_dt = 0.5 * float(dt)
    I4 = [[1.0 if i == j else 0.0 for j in range(4)] for i in range(4)]

    def as_tile(v):
        if _is_const(v):
            return jnp.full((SUB, LANE), float(v), jnp.float32)
        return v

    def kernel(in_ref, out_ref):
        u0, u1, u2 = in_ref[0], in_ref[1], in_ref[2]
        z0, z1 = in_ref[3], in_ref[4]

        a0 = half_dt * u0
        a1 = half_dt * u1
        a2 = half_dt * u2

        # F = I + 0.5*dt*Omega(u), assembled in-kernel from the SoA control.
        F = [[1.0, -a0, -a1, -a2],
             [a0, 1.0, a2, -a1],
             [a1, -a2, 1.0, a0],
             [a2, a1, -a0, 1.0]]

        # Covariance predict:  P_prior = F P0 F^T + Q   (P0, Q constant diag).
        P_prior = _madd(_mm(_mm(F, P0c), _t(F)), Qc)

        # Innovation covariance:  S = H P_prior H^T + R.
        PHT = _mm(P_prior, _t(Hc))
        S = _madd(_mm(Hc, PHT), Rc)

        # Analytic 2x2 inverse.  EUP approx reciprocal + one Newton step gives
        # ~full f32 accuracy while keeping the divide off the VALU chain.
        s00, s01, s10, s11 = S[0][0], S[0][1], S[1][0], S[1][1]
        det = _sub(_mul(s00, s11), _mul(s01, s10))
        r0 = pl.reciprocal(det, approx=True)
        inv_det = r0 * (2.0 - det * r0)
        Sinv = [[s11 * inv_det, -(s01 * inv_det)],
                [-(s10 * inv_det), s00 * inv_det]]

        # Kalman gain and state update:  x_post = x_pred + K (z - hx).
        K = _mm(PHT, Sinv)
        y = [[_sub(z0, hx_c[0])], [_sub(z1, hx_c[1])]]
        Ky = _mm(K, y)
        x_post = [_add(xp_c[i], Ky[i][0]) for i in range(4)]

        # Joseph-form covariance update; R = r*I so K R K^T folds to r*(K K^T)
        # via the constant-zero skipping, and I_KH^T is a free list transpose.
        I_KH = _msub(I4, _mm(K, Hc))
        P_post = _madd(_mm(_mm(I_KH, P_prior), _t(I_KH)),
                       _mm(_mm(K, Rc), _t(K)))

        flat = [P_post[i][j] for i in range(4) for j in range(4)] + x_post
        for idx, v in enumerate(flat):
            out_ref[idx] = as_tile(v)        # 20 unmasked full-vreg stores

    return kernel


# --------------------------------------------------------------------------
# Wrapper: batched single-step forward().  z: (B,2) measurements, u: (B,3).
# --------------------------------------------------------------------------
def _ekf_forward_impl(z, u, dt):
    f32 = jnp.float32
    B = z.shape[0]
    NB = -(-B // TILE)
    pad = NB * TILE - B
    z = z.astype(f32)
    u = u.astype(f32)
    if pad:
        z = jnp.concatenate([z, jnp.zeros((pad, 2), f32)], axis=0)
        u = jnp.concatenate([u, jnp.zeros((pad, 3), f32)], axis=0)

    # SoA packing: (NB, 5, 8, 128); each (8,128) tile holds one scalar channel
    # for 1024 filters.  No zero-padded operand slab — payload only.
    uf = u.T.reshape(3, NB, SUB, LANE)
    zf = z.T.reshape(2, NB, SUB, LANE)
    inp = jnp.concatenate([uf, zf], axis=0).transpose(1, 0, 2, 3)

    out = pl.pallas_call(
        _make_kernel(dt),
        out_shape=jax.ShapeDtypeStruct((NB, 20, SUB, LANE), f32),
        grid=(NB,),
        in_specs=[pl.BlockSpec((None, 5, SUB, LANE), lambda b: (b, 0, 0, 0))],
        out_specs=pl.BlockSpec((None, 20, SUB, LANE), lambda b: (b, 0, 0, 0)),
        compiler_params=pltpu.CompilerParams(
            dimension_semantics=("parallel",)),   # v7x: shard blocks over 2 TCs
    )(inp)

    flat = out.transpose(1, 0, 2, 3).reshape(20, NB * TILE)[:, :B]
    P_post = flat[:16].T.reshape(B, 4, 4)
    x_post = flat[16:].T
    return x_post, P_post


_ekf_forward_jit = jax.jit(_ekf_forward_impl, static_argnums=(2,))


def ekf_forward(z, u, dt=DT):
    """One EKF forward() step for B independent filters (z: (B,2), u: (B,3))."""
    return _ekf_forward_jit(z, u, float(dt))


# --------------------------------------------------------------------------
# Pure-JAX replica of the torch forward() for validation (single sample).
# --------------------------------------------------------------------------
def ekf_reference(z, u, dt=DT):
    f32 = jnp.float32
    x0 = jnp.array([1.0, 0.0, 0.0, 0.0], f32)
    P0 = jnp.eye(4, dtype=f32) * (0.0174 * dt ** 2)
    Q = jnp.eye(4, dtype=f32) * (0.0174 * dt ** 2)
    R = jnp.eye(2, dtype=f32) * (1.0 * dt ** 2)
    u0, u1, u2 = u[0], u[1], u[2]
    Omega = jnp.array([[0, -u0, -u1, -u2],
                       [u0, 0, u2, -u1],
                       [u1, -u2, 0, u0],
                       [u2, u1, -u0, 0]], f32)
    F = jnp.eye(4, dtype=f32) + 0.5 * dt * Omega
    qw, qx, qy, qz = x0
    H = jnp.array(
        [[2 * qy / (1 + (2 * (qw * qy + qx * qz)) ** 2),
          2 * qz / (1 + (2 * (qw * qy + qx * qz)) ** 2),
          2 * qw / (1 - (2 * (qy ** 2 + qz ** 2)) ** 2),
          2 * qx / (1 - (2 * (qy ** 2 + qz ** 2)) ** 2)],
         [2 * qx / (1 + (2 * (qw * qx + qy * qz)) ** 2),
          2 * qw / (1 - (2 * (qx ** 2 + qz ** 2)) ** 2),
          2 * qz / (1 + (2 * (qw * qx + qy * qz)) ** 2),
          2 * qy / (1 - (2 * (qx ** 2 + qz ** 2)) ** 2)]], f32)
    x_upd = x0 + 0.5 * x0
    xp = x_upd / jnp.linalg.norm(x_upd)
    P = F @ P0 @ F.T + Q
    PHT = P @ H.T
    S = H @ PHT + R
    K = PHT @ jnp.linalg.inv(S)
    pw, px, py, pz = xp
    hx = jnp.array(
        [jnp.arctan2(2 * (pw * py + px * pz), 1 - 2 * (py ** 2 + pz ** 2)),
         jnp.arctan2(2 * (pw * px + py * pz), 1 - 2 * (px ** 2 + pz ** 2))], f32)
    y = z.astype(f32) - hx
    x_post = xp + K @ y
    I_KH = jnp.eye(4, dtype=f32) - K @ H
    P_post = I_KH @ P @ I_KH.T + K @ R @ K.T
    return x_post, P_post


if __name__ == "__main__":
    key = jax.random.PRNGKey(0)
    kz, ku = jax.random.split(key)
    B = 2048                                             # 2 grid blocks of 1024 filters
    z = jax.random.normal(kz, (B, 2), jnp.float32) * 0.1  # measured pitch/roll (rad)
    u = jax.random.normal(ku, (B, 3), jnp.float32) * 0.5  # gyro-rate * dt control input

    x_post, P_post = ekf_forward(z, u)
    x_post = jax.block_until_ready(x_post)
    P_post = jax.block_until_ready(P_post)

    x_ref, P_ref = jax.vmap(ekf_reference)(z, u)
    assert x_post.shape == (B, 4) and P_post.shape == (B, 4, 4)
    assert jnp.allclose(x_post, x_ref, rtol=2e-3, atol=2e-4), "x_post mismatch"
    assert jnp.allclose(P_post, P_ref, rtol=2e-2, atol=1e-8), "P_post mismatch"
    print("KERNEL_OK")
</pallas_src>

<mosaic_0001>
module attributes {stable_mosaic.version = 11 : i64} {
  func.func @kernel(%arg0: i32, %arg1: memref<1x5x8x128xf32, #tpu.memory_space<vmem>>, %arg2: memref<1x20x8x128xf32, #tpu.memory_space<vmem>>) attributes {dimension_semantics = [#tpu.dimension_semantics<parallel>], iteration_bounds = array<i64: 2>, scalar_prefetch = 0 : i64, scratch_operands = 0 : i64, tpu.core_type = #tpu.core_type<tc>, window_params = [{transform_indices = @transform_0, window_bounds = array<i64: 1, 5, 8, 128>}, {transform_indices = @transform_1, window_bounds = array<i64: 1, 20, 8, 128>}]} {
    %c0 = arith.constant 0 : index
    %c0_0 = arith.constant 0 : index
    %c0_1 = arith.constant 0 : index
    %c0_2 = arith.constant 0 : index
    %0 = vector.load %arg1[%c0, %c0_0, %c0_1, %c0_2] : memref<1x5x8x128xf32, #tpu.memory_space<vmem>>, vector<1x1x8x128xf32>
    %1 = vector.shape_cast %0 : vector<1x1x8x128xf32> to vector<8x128xf32>
    %c0_3 = arith.constant 0 : index
    %c1 = arith.constant 1 : index
    %c0_4 = arith.constant 0 : index
    %c0_5 = arith.constant 0 : index
    %2 = vector.load %arg1[%c0_3, %c1, %c0_4, %c0_5] : memref<1x5x8x128xf32, #tpu.memory_space<vmem>>, vector<1x1x8x128xf32>
    %3 = vector.shape_cast %2 : vector<1x1x8x128xf32> to vector<8x128xf32>
    %c0_6 = arith.constant 0 : index
    %c2 = arith.constant 2 : index
    %c0_7 = arith.constant 0 : index
    %c0_8 = arith.constant 0 : index
    %4 = vector.load %arg1[%c0_6, %c2, %c0_7, %c0_8] : memref<1x5x8x128xf32, #tpu.memory_space<vmem>>, vector<1x1x8x128xf32>
    %5 = vector.shape_cast %4 : vector<1x1x8x128xf32> to vector<8x128xf32>
    %c0_9 = arith.constant 0 : index
    %c3 = arith.constant 3 : index
    %c0_10 = arith.constant 0 : index
    %c0_11 = arith.constant 0 : index
    %6 = vector.load %arg1[%c0_9, %c3, %c0_10, %c0_11] : memref<1x5x8x128xf32, #tpu.memory_space<vmem>>, vector<1x1x8x128xf32>
    %7 = vector.shape_cast %6 : vector<1x1x8x128xf32> to vector<8x128xf32>
    %c0_12 = arith.constant 0 : index
    %c4 = arith.constant 4 : index
    %c0_13 = arith.constant 0 : index
    %c0_14 = arith.constant 0 : index
    %8 = vector.load %arg1[%c0_12, %c4, %c0_13, %c0_14] : memref<1x5x8x128xf32, #tpu.memory_space<vmem>>, vector<1x1x8x128xf32>
    %9 = vector.shape_cast %8 : vector<1x1x8x128xf32> to vector<8x128xf32>
    %cst = arith.constant 2.500000e-03 : f32
    %10 = vector.broadcast %cst : f32 to vector<8x128xf32>
    %11 = arith.mulf %10, %1 : vector<8x128xf32>
    %cst_15 = arith.constant 2.500000e-03 : f32
    %12 = vector.broadcast %cst_15 : f32 to vector<8x128xf32>
    %13 = arith.mulf %12, %3 : vector<8x128xf32>
    %cst_16 = arith.constant 2.500000e-03 : f32
    %14 = vector.broadcast %cst_16 : f32 to vector<8x128xf32>
    %15 = arith.mulf %14, %5 : vector<8x128xf32>
    %cst_17 = arith.constant 0.000000e+00 : f32
    %16 = vector.broadcast %cst_17 : f32 to vector<8x128xf32>
    %17 = arith.subf %16, %11 : vector<8x128xf32>
    %cst_18 = arith.constant 0.000000e+00 : f32
    %18 = vector.broadcast %cst_18 : f32 to vector<8x128xf32>
    %19 = arith.subf %18, %13 : vector<8x128xf32>
    %cst_19 = arith.constant 0.000000e+00 : f32
    %20 = vector.broadcast %cst_19 : f32 to vector<8x128xf32>
    %21 = arith.subf %20, %15 : vector<8x128xf32>
    %cst_20 = arith.constant 0.000000e+00 : f32
    %22 = vector.broadcast %cst_20 : f32 to vector<8x128xf32>
    %23 = arith.subf %22, %13 : vector<8x128xf32>
    %cst_21 = arith.constant 0.000000e+00 : f32
    %24 = vector.broadcast %cst_21 : f32 to vector<8x128xf32>
    %25 = arith.subf %24, %15 : vector<8x128xf32>
    %cst_22 = arith.constant 0.000000e+00 : f32
    %26 = vector.broadcast %cst_22 : f32 to vector<8x128xf32>
    %27 = arith.subf %26, %11 : vector<8x128xf32>
    %cst_23 = arith.constant 4.350000e-07 : f32
    %28 = vector.broadcast %cst_23 : f32 to vector<8x128xf32>
    %29 = arith.mulf %17, %28 : vector<8x128xf32>
    %cst_24 = arith.constant 4.350000e-07 : f32
    %30 = vector.broadcast %cst_24 : f32 to vector<8x128xf32>
    %31 = arith.mulf %19, %30 : vector<8x128xf32>
    %cst_25 = arith.constant 4.350000e-07 : f32
    %32 = vector.broadcast %cst_25 : f32 to vector<8x128xf32>
    %33 = arith.mulf %21, %32 : vector<8x128xf32>
    %cst_26 = arith.constant 4.350000e-07 : f32
    %34 = vector.broadcast %cst_26 : f32 to vector<8x128xf32>
    %35 = arith.mulf %11, %34 : vector<8x128xf32>
    %cst_27 = arith.constant 4.350000e-07 : f32
    %36 = vector.broadcast %cst_27 : f32 to vector<8x128xf32>
    %37 = arith.mulf %15, %36 : vector<8x128xf32>
    %cst_28 = arith.constant 4.350000e-07 : f32
    %38 = vector.broadcast %cst_28 : f32 to vector<8x128xf32>
    %39 = arith.mulf %23, %38 : vector<8x128xf32>
    %cst_29 = arith.constant 4.350000e-07 : f32
    %40 = vector.broadcast %cst_29 : f32 to vector<8x128xf32>
    %41 = arith.mulf %13, %40 : vector<8x128xf32>
    %cst_30 = arith.constant 4.350000e-07 : f32
    %42 = vector.broadcast %cst_30 : f32 to vector<8x128xf32>
    %43 = arith.mulf %25, %42 : vector<8x128xf32>
    %cst_31 = arith.constant 4.350000e-07 : f32
    %44 = vector.broadcast %cst_31 : f32 to vector<8x128xf32>
    %45 = arith.mulf %11, %44 : vector<8x128xf32>
    %cst_32 = arith.constant 4.350000e-07 : f32
    %46 = vector.broadcast %cst_32 : f32 to vector<8x128xf32>
    %47 = arith.mulf %15, %46 : vector<8x128xf32>
    %cst_33 = arith.constant 4.350000e-07 : f32
    %48 = vector.broadcast %cst_33 : f32 to vector<8x128xf32>
    %49 = arith.mulf %13, %48 : vector<8x128xf32>
    %cst_34 = arith.constant 4.350000e-07 : f32
    %50 = vector.broadcast %cst_34 : f32 to vector<8x128xf32>
    %51 = arith.mulf %27, %50 : vector<8x128xf32>
    %52 = arith.mulf %29, %17 : vector<8x128xf32>
    %cst_35 = arith.constant 4.350000e-07 : f32
    %53 = vector.broadcast %cst_35 : f32 to vector<8x128xf32>
    %54 = arith.addf %53, %52 : vector<8x128xf32>
    %55 = arith.mulf %31, %19 : vector<8x128xf32>
    %56 = arith.addf %54, %55 : vector<8x128xf32>
    %57 = arith.mulf %33, %21 : vector<8x128xf32>
    %58 = arith.addf %56, %57 : vector<8x128xf32>
    %cst_36 = arith.constant 4.350000e-07 : f32
    %59 = vector.broadcast %cst_36 : f32 to vector<8x128xf32>
    %60 = arith.mulf %59, %11 : vector<8x128xf32>
    %61 = arith.addf %60, %29 : vector<8x128xf32>
    %62 = arith.mulf %31, %15 : vector<8x128xf32>
    %63 = arith.addf %61, %62 : vector<8x128xf32>
    %64 = arith.mulf %33, %23 : vector<8x128xf32>
    %65 = arith.addf %63, %64 : vector<8x128xf32>
    %cst_37 = arith.constant 4.350000e-07 : f32
    %66 = vector.broadcast %cst_37 : f32 to vector<8x128xf32>
    %67 = arith.mulf %66, %13 : vector<8x128xf32>
    %68 = arith.mulf %29, %25 : vector<8x128xf32>
    %69 = arith.addf %67, %68 : vector<8x128xf32>
    %70 = arith.addf %69, %31 : vector<8x128xf32>
    %71 = arith.mulf %33, %11 : vector<8x128xf32>
    %72 = arith.addf %70, %71 : vector<8x128xf32>
    %cst_38 = arith.constant 4.350000e-07 : f32
    %73 = vector.broadcast %cst_38 : f32 to vector<8x128xf32>
    %74 = arith.mulf %73, %15 : vector<8x128xf32>
    %75 = arith.mulf %29, %13 : vector<8x128xf32>
    %76 = arith.addf %74, %75 : vector<8x128xf32>
    %77 = arith.mulf %31, %27 : vector<8x128xf32>
    %78 = arith.addf %76, %77 : vector<8x128xf32>
    %79 = arith.addf %78, %33 : vector<8x128xf32>
    %cst_39 = arith.constant 4.350000e-07 : f32
    %80 = vector.broadcast %cst_39 : f32 to vector<8x128xf32>
    %81 = arith.mulf %80, %17 : vector<8x128xf32>
    %82 = arith.addf %35, %81 : vector<8x128xf32>
    %83 = arith.mulf %37, %19 : vector<8x128xf32>
    %84 = arith.addf %82, %83 : vector<8x128xf32>
    %85 = arith.mulf %39, %21 : vector<8x128xf32>
    %86 = arith.addf %84, %85 : vector<8x128xf32>
    %87 = arith.mulf %35, %11 : vector<8x128xf32>
    %cst_40 = arith.constant 4.350000e-07 : f32
    %88 = vector.broadcast %cst_40 : f32 to vector<8x128xf32>
    %89 = arith.addf %87, %88 : vector<8x128xf32>
    %90 = arith.mulf %37, %15 : vector<8x128xf32>
    %91 = arith.addf %89, %90 : vector<8x128xf32>
    %92 = arith.mulf %39, %23 : vector<8x128xf32>
    %93 = arith.addf %91, %92 : vector<8x128xf32>
    %94 = arith.mulf %35, %13 : vector<8x128xf32>
    %cst_41 = arith.constant 4.350000e-07 : f32
    %95 = vector.broadcast %cst_41 : f32 to vector<8x128xf32>
    %96 = arith.mulf %95, %25 : vector<8x128xf32>
    %97 = arith.addf %94, %96 : vector<8x128xf32>
    %98 = arith.addf %97, %37 : vector<8x128xf32>
    %99 = arith.mulf %39, %11 : vector<8x128xf32>
    %100 = arith.addf %98, %99 : vector<8x128xf32>
    %101 = arith.mulf %35, %15 : vector<8x128xf32>
    %cst_42 = arith.constant 4.350000e-07 : f32
    %102 = vector.broadcast %cst_42 : f32 to vector<8x128xf32>
    %103 = arith.mulf %102, %13 : vector<8x128xf32>
    %104 = arith.addf %101, %103 : vector<8x128xf32>
    %105 = arith.mulf %37, %27 : vector<8x128xf32>
    %106 = arith.addf %104, %105 : vector<8x128xf32>
    %107 = arith.addf %106, %39 : vector<8x128xf32>
    %108 = arith.mulf %43, %17 : vector<8x128xf32>
    %109 = arith.addf %41, %108 : vector<8x128xf32>
    %cst_43 = arith.constant 4.350000e-07 : f32
    %110 = vector.broadcast %cst_43 : f32 to vector<8x128xf32>
    %111 = arith.mulf %110, %19 : vector<8x128xf32>
    %112 = arith.addf %109, %111 : vector<8x128xf32>
    %113 = arith.mulf %45, %21 : vector<8x128xf32>
    %114 = arith.addf %112, %113 : vector<8x128xf32>
    %115 = arith.mulf %41, %11 : vector<8x128xf32>
    %116 = arith.addf %115, %43 : vector<8x128xf32>
    %cst_44 = arith.constant 4.350000e-07 : f32
    %117 = vector.broadcast %cst_44 : f32 to vector<8x128xf32>
    %118 = arith.mulf %117, %15 : vector<8x128xf32>
    %119 = arith.addf %116, %118 : vector<8x128xf32>
    %120 = arith.mulf %45, %23 : vector<8x128xf32>
    %121 = arith.addf %119, %120 : vector<8x128xf32>
    %122 = arith.mulf %41, %13 : vector<8x128xf32>
    %123 = arith.mulf %43, %25 : vector<8x128xf32>
    %124 = arith.addf %122, %123 : vector<8x128xf32>
    %cst_45 = arith.constant 4.350000e-07 : f32
    %125 = vector.broadcast %cst_45 : f32 to vector<8x128xf32>
    %126 = arith.addf %124, %125 : vector<8x128xf32>
    %127 = arith.mulf %45, %11 : vector<8x128xf32>
    %128 = arith.addf %126, %127 : vector<8x128xf32>
    %129 = arith.mulf %41, %15 : vector<8x128xf32>
    %130 = arith.mulf %43, %13 : vector<8x128xf32>
    %131 = arith.addf %129, %130 : vector<8x128xf32>
    %cst_46 = arith.constant 4.350000e-07 : f32
    %132 = vector.broadcast %cst_46 : f32 to vector<8x128xf32>
    %133 = arith.mulf %132, %27 : vector<8x128xf32>
    %134 = arith.addf %131, %133 : vector<8x128xf32>
    %135 = arith.addf %134, %45 : vector<8x128xf32>
    %136 = arith.mulf %49, %17 : vector<8x128xf32>
    %137 = arith.addf %47, %136 : vector<8x128xf32>
    %138 = arith.mulf %51, %19 : vector<8x128xf32>
    %139 = arith.addf %137, %138 : vector<8x128xf32>
    %cst_47 = arith.constant 4.350000e-07 : f32
    %140 = vector.broadcast %cst_47 : f32 to vector<8x128xf32>
    %141 = arith.mulf %140, %21 : vector<8x128xf32>
    %142 = arith.addf %139, %141 : vector<8x128xf32>
    %143 = arith.mulf %47, %11 : vector<8x128xf32>
    %144 = arith.addf %143, %49 : vector<8x128xf32>
    %145 = arith.mulf %51, %15 : vector<8x128xf32>
    %146 = arith.addf %144, %145 : vector<8x128xf32>
    %cst_48 = arith.constant 4.350000e-07 : f32
    %147 = vector.broadcast %cst_48 : f32 to vector<8x128xf32>
    %148 = arith.mulf %147, %23 : vector<8x128xf32>
    %149 = arith.addf %146, %148 : vector<8x128xf32>
    %150 = arith.mulf %47, %13 : vector<8x128xf32>
    %151 = arith.mulf %49, %25 : vector<8x128xf32>
    %152 = arith.addf %150, %151 : vector<8x128xf32>
    %153 = arith.addf %152, %51 : vector<8x128xf32>
    %cst_49 = arith.constant 4.350000e-07 : f32
    %154 = vector.broadcast %cst_49 : f32 to vector<8x128xf32>
    %155 = arith.mulf %154, %11 : vector<8x128xf32>
    %156 = arith.addf %153, %155 : vector<8x128xf32>
    %157 = arith.mulf %47, %15 : vector<8x128xf32>
    %158 = arith.mulf %49, %13 : vector<8x128xf32>
    %159 = arith.addf %157, %158 : vector<8x128xf32>
    %160 = arith.mulf %51, %27 : vector<8x128xf32>
    %161 = arith.addf %159, %160 : vector<8x128xf32>
    %cst_50 = arith.constant 4.350000e-07 : f32
    %162 = vector.broadcast %cst_50 : f32 to vector<8x128xf32>
    %163 = arith.addf %161, %162 : vector<8x128xf32>
    %cst_51 = arith.constant 4.350000e-07 : f32
    %164 = vector.broadcast %cst_51 : f32 to vector<8x128xf32>
    %165 = arith.addf %58, %164 : vector<8x128xf32>
    %cst_52 = arith.constant 4.350000e-07 : f32
    %166 = vector.broadcast %cst_52 : f32 to vector<8x128xf32>
    %167 = arith.addf %93, %166 : vector<8x128xf32>
    %cst_53 = arith.constant 4.350000e-07 : f32
    %168 = vector.broadcast %cst_53 : f32 to vector<8x128xf32>
    %169 = arith.addf %128, %168 : vector<8x128xf32>
    %cst_54 = arith.constant 4.350000e-07 : f32
    %170 = vector.broadcast %cst_54 : f32 to vector<8x128xf32>
    %171 = arith.addf %163, %170 : vector<8x128xf32>
    %cst_55 = arith.constant 2.000000e+00 : f32
    %172 = vector.broadcast %cst_55 : f32 to vector<8x128xf32>
    %173 = arith.mulf %72, %172 : vector<8x128xf32>
    %cst_56 = arith.constant 2.000000e+00 : f32
    %174 = vector.broadcast %cst_56 : f32 to vector<8x128xf32>
    %175 = arith.mulf %65, %174 : vector<8x128xf32>
    %cst_57 = arith.constant 2.000000e+00 : f32
    %176 = vector.broadcast %cst_57 : f32 to vector<8x128xf32>
    %177 = arith.mulf %100, %176 : vector<8x128xf32>
    %cst_58 = arith.constant 2.000000e+00 : f32
    %178 = vector.broadcast %cst_58 : f32 to vector<8x128xf32>
    %179 = arith.mulf %167, %178 : vector<8x128xf32>
    %cst_59 = arith.constant 2.000000e+00 : f32
    %180 = vector.broadcast %cst_59 : f32 to vector<8x128xf32>
    %181 = arith.mulf %169, %180 : vector<8x128xf32>
    %cst_60 = arith.constant 2.000000e+00 : f32
    %182 = vector.broadcast %cst_60 : f32 to vector<8x128xf32>
    %183 = arith.mulf %121, %182 : vector<8x128xf32>
    %cst_61 = arith.constant 2.000000e+00 : f32
    %184 = vector.broadcast %cst_61 : f32 to vector<8x128xf32>
    %185 = arith.mulf %156, %184 : vector<8x128xf32>
    %cst_62 = arith.constant 2.000000e+00 : f32
    %186 = vector.broadcast %cst_62 : f32 to vector<8x128xf32>
    %187 = arith.mulf %149, %186 : vector<8x128xf32>
    %cst_63 = arith.constant 2.000000e+00 : f32
    %188 = vector.broadcast %cst_63 : f32 to vector<8x128xf32>
    %189 = arith.mulf %188, %181 : vector<8x128xf32>
    %cst_64 = arith.constant 2.000000e+00 : f32
    %190 = vector.broadcast %cst_64 : f32 to vector<8x128xf32>
    %191 = arith.mulf %190, %183 : vector<8x128xf32>
    %cst_65 = arith.constant 2.000000e+00 : f32
    %192 = vector.broadcast %cst_65 : f32 to vector<8x128xf32>
    %193 = arith.mulf %192, %177 : vector<8x128xf32>
    %cst_66 = arith.constant 2.000000e+00 : f32
    %194 = vector.broadcast %cst_66 : f32 to vector<8x128xf32>
    %195 = arith.mulf %194, %179 : vector<8x128xf32>
    %cst_67 = arith.constant 2.500000e-05 : f32
    %196 = vector.broadcast %cst_67 : f32 to vector<8x128xf32>
    %197 = arith.addf %189, %196 : vector<8x128xf32>
    %cst_68 = arith.constant 2.500000e-05 : f32
    %198 = vector.broadcast %cst_68 : f32 to vector<8x128xf32>
    %199 = arith.addf %195, %198 : vector<8x128xf32>
    %200 = arith.mulf %197, %199 : vector<8x128xf32>
    %201 = arith.mulf %191, %193 : vector<8x128xf32>
    %202 = arith.subf %200, %201 : vector<8x128xf32>
    %203 = tpu.reciprocal %202 {approx = true} : vector<8x128xf32> -> vector<8x128xf32>
    %204 = arith.mulf %202, %203 : vector<8x128xf32>
    %cst_69 = arith.constant 2.000000e+00 : f32
    %205 = vector.broadcast %cst_69 : f32 to vector<8x128xf32>
    %206 = arith.subf %205, %204 : vector<8x128xf32>
    %207 = arith.mulf %203, %206 : vector<8x128xf32>
    %208 = arith.mulf %199, %207 : vector<8x128xf32>
    %209 = arith.mulf %191, %207 : vector<8x128xf32>
    %cst_70 = arith.constant 0.000000e+00 : f32
    %210 = vector.broadcast %cst_70 : f32 to vector<8x128xf32>
    %211 = arith.subf %210, %209 : vector<8x128xf32>
    %212 = arith.mulf %193, %207 : vector<8x128xf32>
    %cst_71 = arith.constant 0.000000e+00 : f32
    %213 = vector.broadcast %cst_71 : f32 to vector<8x128xf32>
    %214 = arith.subf %213, %212 : vector<8x128xf32>
    %215 = arith.mulf %197, %207 : vector<8x128xf32>
    %216 = arith.mulf %173, %208 : vector<8x128xf32>
    %217 = arith.mulf %175, %214 : vector<8x128xf32>
    %218 = arith.addf %216, %217 : vector<8x128xf32>
    %219 = arith.mulf %173, %211 : vector<8x128xf32>
    %220 = arith.mulf %175, %215 : vector<8x128xf32>
    %221 = arith.addf %219, %220 : vector<8x128xf32>
    %222 = arith.mulf %177, %208 : vector<8x128xf32>
    %223 = arith.mulf %179, %214 : vector<8x128xf32>
    %224 = arith.addf %222, %223 : vector<8x128xf32>
    %225 = arith.mulf %177, %211 : vector<8x128xf32>
    %226 = arith.mulf %179, %215 : vector<8x128xf32>
    %227 = arith.addf %225, %226 : vector<8x128xf32>
    %228 = arith.mulf %181, %208 : vector<8x128xf32>
    %229 = arith.mulf %183, %214 : vector<8x128xf32>
    %230 = arith.addf %228, %229 : vector<8x128xf32>
    %231 = arith.mulf %181, %211 : vector<8x128xf32>
    %232 = arith.mulf %183, %215 : vector<8x128xf32>
    %233 = arith.addf %231, %232 : vector<8x128xf32>
    %234 = arith.mulf %185, %208 : vector<8x128xf32>
    %235 = arith.mulf %187, %214 : vector<8x128xf32>
    %236 = arith.addf %234, %235 : vector<8x128xf32>
    %237 = arith.mulf %185, %211 : vector<8x128xf32>
    %238 = arith.mulf %187, %215 : vector<8x128xf32>
    %239 = arith.addf %237, %238 : vector<8x128xf32>
    %240 = arith.mulf %218, %7 : vector<8x128xf32>
    %241 = arith.mulf %221, %9 : vector<8x128xf32>
    %242 = arith.addf %240, %241 : vector<8x128xf32>
    %243 = arith.mulf %224, %7 : vector<8x128xf32>
    %244 = arith.mulf %227, %9 : vector<8x128xf32>
    %245 = arith.addf %243, %244 : vector<8x128xf32>
    %246 = arith.mulf %230, %7 : vector<8x128xf32>
    %247 = arith.mulf %233, %9 : vector<8x128xf32>
    %248 = arith.addf %246, %247 : vector<8x128xf32>
    %249 = arith.mulf %236, %7 : vector<8x128xf32>
    %250 = arith.mulf %239, %9 : vector<8x128xf32>
    %251 = arith.addf %249, %250 : vector<8x128xf32>
    %cst_72 = arith.constant 1.000000e+00 : f32
    %252 = vector.broadcast %cst_72 : f32 to vector<8x128xf32>
    %253 = arith.addf %252, %242 : vector<8x128xf32>
    %cst_73 = arith.constant 2.000000e+00 : f32
    %254 = vector.broadcast %cst_73 : f32 to vector<8x128xf32>
    %255 = arith.mulf %221, %254 : vector<8x128xf32>
    %cst_74 = arith.constant 2.000000e+00 : f32
    %256 = vector.broadcast %cst_74 : f32 to vector<8x128xf32>
    %257 = arith.mulf %218, %256 : vector<8x128xf32>
    %cst_75 = arith.constant 2.000000e+00 : f32
    %258 = vector.broadcast %cst_75 : f32 to vector<8x128xf32>
    %259 = arith.mulf %227, %258 : vector<8x128xf32>
    %cst_76 = arith.constant 2.000000e+00 : f32
    %260 = vector.broadcast %cst_76 : f32 to vector<8x128xf32>
    %261 = arith.mulf %224, %260 : vector<8x128xf32>
    %cst_77 = arith.constant 2.000000e+00 : f32
    %262 = vector.broadcast %cst_77 : f32 to vector<8x128xf32>
    %263 = arith.mulf %233, %262 : vector<8x128xf32>
    %cst_78 = arith.constant 2.000000e+00 : f32
    %264 = vector.broadcast %cst_78 : f32 to vector<8x128xf32>
    %265 = arith.mulf %230, %264 : vector<8x128xf32>
    %cst_79 = arith.constant 2.000000e+00 : f32
    %266 = vector.broadcast %cst_79 : f32 to vector<8x128xf32>
    %267 = arith.mulf %239, %266 : vector<8x128xf32>
    %cst_80 = arith.constant 2.000000e+00 : f32
    %268 = vector.broadcast %cst_80 : f32 to vector<8x128xf32>
    %269 = arith.mulf %236, %268 : vector<8x128xf32>
    %cst_81 = arith.constant 0.000000e+00 : f32
    %270 = vector.broadcast %cst_81 : f32 to vector<8x128xf32>
    %271 = arith.subf %270, %255 : vector<8x128xf32>
    %cst_82 = arith.constant 0.000000e+00 : f32
    %272 = vector.broadcast %cst_82 : f32 to vector<8x128xf32>
    %273 = arith.subf %272, %257 : vector<8x128xf32>
    %cst_83 = arith.constant 1.000000e+00 : f32
    %274 = vector.broadcast %cst_83 : f32 to vector<8x128xf32>
    %275 = arith.subf %274, %259 : vector<8x128xf32>
    %cst_84 = arith.constant 0.000000e+00 : f32
    %276 = vector.broadcast %cst_84 : f32 to vector<8x128xf32>
    %277 = arith.subf %276, %261 : vector<8x128xf32>
    %cst_85 = arith.constant 0.000000e+00 : f32
    %278 = vector.broadcast %cst_85 : f32 to vector<8x128xf32>
    %279 = arith.subf %278, %263 : vector<8x128xf32>
    %cst_86 = arith.constant 1.000000e+00 : f32
    %280 = vector.broadcast %cst_86 : f32 to vector<8x128xf32>
    %281 = arith.subf %280, %265 : vector<8x128xf32>
    %cst_87 = arith.constant 0.000000e+00 : f32
    %282 = vector.broadcast %cst_87 : f32 to vector<8x128xf32>
    %283 = arith.subf %282, %267 : vector<8x128xf32>
    %cst_88 = arith.constant 0.000000e+00 : f32
    %284 = vector.broadcast %cst_88 : f32 to vector<8x128xf32>
    %285 = arith.subf %284, %269 : vector<8x128xf32>
    %286 = arith.mulf %271, %86 : vector<8x128xf32>
    %287 = arith.addf %165, %286 : vector<8x128xf32>
    %288 = arith.mulf %273, %114 : vector<8x128xf32>
    %289 = arith.addf %287, %288 : vector<8x128xf32>
    %290 = arith.mulf %271, %167 : vector<8x128xf32>
    %291 = arith.addf %65, %290 : vector<8x128xf32>
    %292 = arith.mulf %273, %121 : vector<8x128xf32>
    %293 = arith.addf %291, %292 : vector<8x128xf32>
    %294 = arith.mulf %271, %100 : vector<8x128xf32>
    %295 = arith.addf %72, %294 : vector<8x128xf32>
    %296 = arith.mulf %273, %169 : vector<8x128xf32>
    %297 = arith.addf %295, %296 : vector<8x128xf32>
    %298 = arith.mulf %271, %107 : vector<8x128xf32>
    %299 = arith.addf %79, %298 : vector<8x128xf32>
    %300 = arith.mulf %273, %135 : vector<8x128xf32>
    %301 = arith.addf %299, %300 : vector<8x128xf32>
    %302 = arith.mulf %275, %86 : vector<8x128xf32>
    %303 = arith.mulf %277, %114 : vector<8x128xf32>
    %304 = arith.addf %302, %303 : vector<8x128xf32>
    %305 = arith.mulf %275, %167 : vector<8x128xf32>
    %306 = arith.mulf %277, %121 : vector<8x128xf32>
    %307 = arith.addf %305, %306 : vector<8x128xf32>
    %308 = arith.mulf %275, %100 : vector<8x128xf32>
    %309 = arith.mulf %277, %169 : vector<8x128xf32>
    %310 = arith.addf %308, %309 : vector<8x128xf32>
    %311 = arith.mulf %275, %107 : vector<8x128xf32>
    %312 = arith.mulf %277, %135 : vector<8x128xf32>
    %313 = arith.addf %311, %312 : vector<8x128xf32>
    %314 = arith.mulf %279, %86 : vector<8x128xf32>
    %315 = arith.mulf %281, %114 : vector<8x128xf32>
    %316 = arith.addf %314, %315 : vector<8x128xf32>
    %317 = arith.mulf %279, %167 : vector<8x128xf32>
    %318 = arith.mulf %281, %121 : vector<8x128xf32>
    %319 = arith.addf %317, %318 : vector<8x128xf32>
    %320 = arith.mulf %279, %100 : vector<8x128xf32>
    %321 = arith.mulf %281, %169 : vector<8x128xf32>
    %322 = arith.addf %320, %321 : vector<8x128xf32>
    %323 = arith.mulf %279, %107 : vector<8x128xf32>
    %324 = arith.mulf %281, %135 : vector<8x128xf32>
    %325 = arith.addf %323, %324 : vector<8x128xf32>
    %326 = arith.mulf %283, %86 : vector<8x128xf32>
    %327 = arith.mulf %285, %114 : vector<8x128xf32>
    %328 = arith.addf %326, %327 : vector<8x128xf32>
    %329 = arith.addf %328, %142 : vector<8x128xf32>
    %330 = arith.mulf %283, %167 : vector<8x128xf32>
    %331 = arith.mulf %285, %121 : vector<8x128xf32>
    %332 = arith.addf %330, %331 : vector<8x128xf32>
    %333 = arith.addf %332, %149 : vector<8x128xf32>
    %334 = arith.mulf %283, %100 : vector<8x128xf32>
    %335 = arith.mulf %285, %169 : vector<8x128xf32>
    %336 = arith.addf %334, %335 : vector<8x128xf32>
    %337 = arith.addf %336, %156 : vector<8x128xf32>
    %338 = arith.mulf %283, %107 : vector<8x128xf32>
    %339 = arith.mulf %285, %135 : vector<8x128xf32>
    %340 = arith.addf %338, %339 : vector<8x128xf32>
    %341 = arith.addf %340, %171 : vector<8x128xf32>
    %342 = arith.mulf %293, %271 : vector<8x128xf32>
    %343 = arith.addf %289, %342 : vector<8x128xf32>
    %344 = arith.mulf %297, %273 : vector<8x128xf32>
    %345 = arith.addf %343, %344 : vector<8x128xf32>
    %346 = arith.mulf %293, %275 : vector<8x128xf32>
    %347 = arith.mulf %297, %277 : vector<8x128xf32>
    %348 = arith.addf %346, %347 : vector<8x128xf32>
    %349 = arith.mulf %293, %279 : vector<8x128xf32>
    %350 = arith.mulf %297, %281 : vector<8x128xf32>
    %351 = arith.addf %349, %350 : vector<8x128xf32>
    %352 = arith.mulf %293, %283 : vector<8x128xf32>
    %353 = arith.mulf %297, %285 : vector<8x128xf32>
    %354 = arith.addf %352, %353 : vector<8x128xf32>
    %355 = arith.addf %354, %301 : vector<8x128xf32>
    %356 = arith.mulf %307, %271 : vector<8x128xf32>
    %357 = arith.addf %304, %356 : vector<8x128xf32>
    %358 = arith.mulf %310, %273 : vector<8x128xf32>
    %359 = arith.addf %357, %358 : vector<8x128xf32>
    %360 = arith.mulf %307, %275 : vector<8x128xf32>
    %361 = arith.mulf %310, %277 : vector<8x128xf32>
    %362 = arith.addf %360, %361 : vector<8x128xf32>
    %363 = arith.mulf %307, %279 : vector<8x128xf32>
    %364 = arith.mulf %310, %281 : vector<8x128xf32>
    %365 = arith.addf %363, %364 : vector<8x128xf32>
    %366 = arith.mulf %307, %283 : vector<8x128xf32>
    %367 = arith.mulf %310, %285 : vector<8x128xf32>
    %368 = arith.addf %366, %367 : vector<8x128xf32>
    %369 = arith.addf %368, %313 : vector<8x128xf32>
    %370 = arith.mulf %319, %271 : vector<8x128xf32>
    %371 = arith.addf %316, %370 : vector<8x128xf32>
    %372 = arith.mulf %322, %273 : vector<8x128xf32>
    %373 = arith.addf %371, %372 : vector<8x128xf32>
    %374 = arith.mulf %319, %275 : vector<8x128xf32>
    %375 = arith.mulf %322, %277 : vector<8x128xf32>
    %376 = arith.addf %374, %375 : vector<8x128xf32>
    %377 = arith.mulf %319, %279 : vector<8x128xf32>
    %378 = arith.mulf %322, %281 : vector<8x128xf32>
    %379 = arith.addf %377, %378 : vector<8x128xf32>
    %380 = arith.mulf %319, %283 : vector<8x128xf32>
    %381 = arith.mulf %322, %285 : vector<8x128xf32>
    %382 = arith.addf %380, %381 : vector<8x128xf32>
    %383 = arith.addf %382, %325 : vector<8x128xf32>
    %384 = arith.mulf %333, %271 : vector<8x128xf32>
    %385 = arith.addf %329, %384 : vector<8x128xf32>
    %386 = arith.mulf %337, %273 : vector<8x128xf32>
    %387 = arith.addf %385, %386 : vector<8x128xf32>
    %388 = arith.mulf %333, %275 : vector<8x128xf32>
    %389 = arith.mulf %337, %277 : vector<8x128xf32>
    %390 = arith.addf %388, %389 : vector<8x128xf32>
    %391 = arith.mulf %333, %279 : vector<8x128xf32>
    %392 = arith.mulf %337, %281 : vector<8x128xf32>
    %393 = arith.addf %391, %392 : vector<8x128xf32>
    %394 = arith.mulf %333, %283 : vector<8x128xf32>
    %395 = arith.mulf %337, %285 : vector<8x128xf32>
    %396 = arith.addf %394, %395 : vector<8x128xf32>
    %397 = arith.addf %396, %341 : vector<8x128xf32>
    %cst_89 = arith.constant 2.500000e-05 : f32
    %398 = vector.broadcast %cst_89 : f32 to vector<8x128xf32>
    %399 = arith.mulf %218, %398 : vector<8x128xf32>
    %cst_90 = arith.constant 2.500000e-05 : f32
    %400 = vector.broadcast %cst_90 : f32 to vector<8x128xf32>
    %401 = arith.mulf %221, %400 : vector<8x128xf32>
    %cst_91 = arith.constant 2.500000e-05 : f32
    %402 = vector.broadcast %cst_91 : f32 to vector<8x128xf32>
    %403 = arith.mulf %224, %402 : vector<8x128xf32>
    %cst_92 = arith.constant 2.500000e-05 : f32
    %404 = vector.broadcast %cst_92 : f32 to vector<8x128xf32>
    %405 = arith.mulf %227, %404 : vector<8x128xf32>
    %cst_93 = arith.constant 2.500000e-05 : f32
    %406 = vector.broadcast %cst_93 : f32 to vector<8x128xf32>
    %407 = arith.mulf %230, %406 : vector<8x128xf32>
    %cst_94 = arith.constant 2.500000e-05 : f32
    %408 = vector.broadcast %cst_94 : f32 to vector<8x128xf32>
    %409 = arith.mulf %233, %408 : vector<8x128xf32>
    %cst_95 = arith.constant 2.500000e-05 : f32
    %410 = vector.broadcast %cst_95 : f32 to vector<8x128xf32>
    %411 = arith.mulf %236, %410 : vector<8x128xf32>
    %cst_96 = arith.constant 2.500000e-05 : f32
    %412 = vector.broadcast %cst_96 : f32 to vector<8x128xf32>
    %413 = arith.mulf %239, %412 : vector<8x128xf32>
    %414 = arith.mulf %399, %218 : vector<8x128xf32>
    %415 = arith.mulf %401, %221 : vector<8x128xf32>
    %416 = arith.addf %414, %415 : vector<8x128xf32>
    %417 = arith.mulf %399, %224 : vector<8x128xf32>
    %418 = arith.mulf %401, %227 : vector<8x128xf32>
    %419 = arith.addf %417, %418 : vector<8x128xf32>
    %420 = arith.mulf %399, %230 : vector<8x128xf32>
    %421 = arith.mulf %401, %233 : vector<8x128xf32>
    %422 = arith.addf %420, %421 : vector<8x128xf32>
    %423 = arith.mulf %399, %236 : vector<8x128xf32>
    %424 = arith.mulf %401, %239 : vector<8x128xf32>
    %425 = arith.addf %423, %424 : vector<8x128xf32>
    %426 = arith.mulf %403, %218 : vector<8x128xf32>
    %427 = arith.mulf %405, %221 : vector<8x128xf32>
    %428 = arith.addf %426, %427 : vector<8x128xf32>
    %429 = arith.mulf %403, %224 : vector<8x128xf32>
    %430 = arith.mulf %405, %227 : vector<8x128xf32>
    %431 = arith.addf %429, %430 : vector<8x128xf32>
    %432 = arith.mulf %403, %230 : vector<8x128xf32>
    %433 = arith.mulf %405, %233 : vector<8x128xf32>
    %434 = arith.addf %432, %433 : vector<8x128xf32>
    %435 = arith.mulf %403, %236 : vector<8x128xf32>
    %436 = arith.mulf %405, %239 : vector<8x128xf32>
    %437 = arith.addf %435, %436 : vector<8x128xf32>
    %438 = arith.mulf %407, %218 : vector<8x128xf32>
    %439 = arith.mulf %409, %221 : vector<8x128xf32>
    %440 = arith.addf %438, %439 : vector<8x128xf32>
    %441 = arith.mulf %407, %224 : vector<8x128xf32>
    %442 = arith.mulf %409, %227 : vector<8x128xf32>
    %443 = arith.addf %441, %442 : vector<8x128xf32>
    %444 = arith.mulf %407, %230 : vector<8x128xf32>
    %445 = arith.mulf %409, %233 : vector<8x128xf32>
    %446 = arith.addf %444, %445 : vector<8x128xf32>
    %447 = arith.mulf %407, %236 : vector<8x128xf32>
    %448 = arith.mulf %409, %239 : vector<8x128xf32>
    %449 = arith.addf %447, %448 : vector<8x128xf32>
    %450 = arith.mulf %411, %218 : vector<8x128xf32>
    %451 = arith.mulf %413, %221 : vector<8x128xf32>
    %452 = arith.addf %450, %451 : vector<8x128xf32>
    %453 = arith.mulf %411, %224 : vector<8x128xf32>
    %454 = arith.mulf %413, %227 : vector<8x128xf32>
    %455 = arith.addf %453, %454 : vector<8x128xf32>
    %456 = arith.mulf %411, %230 : vector<8x128xf32>
    %457 = arith.mulf %413, %233 : vector<8x128xf32>
    %458 = arith.addf %456, %457 : vector<8x128xf32>
    %459 = arith.mulf %411, %236 : vector<8x128xf32>
    %460 = arith.mulf %413, %239 : vector<8x128xf32>
    %461 = arith.addf %459, %460 : vector<8x128xf32>
    %462 = arith.addf %345, %416 : vector<8x128xf32>
    %463 = arith.addf %348, %419 : vector<8x128xf32>
    %464 = arith.addf %351, %422 : vector<8x128xf32>
    %465 = arith.addf %355, %425 : vector<8x128xf32>
    %466 = arith.addf %359, %428 : vector<8x128xf32>
    %467 = arith.addf %362, %431 : vector<8x128xf32>
    %468 = arith.addf %365, %434 : vector<8x128xf32>
    %469 = arith.addf %369, %437 : vector<8x128xf32>
    %470 = arith.addf %373, %440 : vector<8x128xf32>
    %471 = arith.addf %376, %443 : vector<8x128xf32>
    %472 = arith.addf %379, %446 : vector<8x128xf32>
    %473 = arith.addf %383, %449 : vector<8x128xf32>
    %474 = arith.addf %387, %452 : vector<8x128xf32>
    %475 = arith.addf %390, %455 : vector<8x128xf32>
    %476 = arith.addf %393, %458 : vector<8x128xf32>
    %477 = arith.addf %397, %461 : vector<8x128xf32>
    %c0_97 = arith.constant 0 : index
    %c0_98 = arith.constant 0 : index
    %c0_99 = arith.constant 0 : index
    %c0_100 = arith.constant 0 : index
    %478 = vector.load %arg2[%c0_97, %c0_98, %c0_99, %c0_100] : memref<1x20x8x128xf32, #tpu.memory_space<vmem>>, vector<1x1x8x128xf32>
    %479 = vector.shape_cast %478 : vector<1x1x8x128xf32> to vector<8x128xf32>
    %480 = vector.shape_cast %462 : vector<8x128xf32> to vector<1x1x8x128xf32>
    tpu.vector_store %arg2[%c0_97, %c0_98, %c0_99, %c0_100], %480 {strides = array<i32>} : memref<1x20x8x128xf32, #tpu.memory_space<vmem>>, vector<1x1x8x128xf32>,
    %c0_101 = arith.constant 0 : index
    %c1_102 = arith.constant 1 : index
    %c0_103 = arith.constant 0 : index
    %c0_104 = arith.constant 0 : index
    %481 = vector.load %arg2[%c0_101, %c1_102, %c0_103, %c0_104] : memref<1x20x8x128xf32, #tpu.memory_space<vmem>>, vector<1x1x8x128xf32>
    %482 = vector.shape_cast %481 : vector<1x1x8x128xf32> to vector<8x128xf32>
    %483 = vector.shape_cast %463 : vector<8x128xf32> to vector<1x1x8x128xf32>
    tpu.vector_store %arg2[%c0_101, %c1_102, %c0_103, %c0_104], %483 {strides = array<i32>} : memref<1x20x8x128xf32, #tpu.memory_space<vmem>>, vector<1x1x8x128xf32>,
    %c0_105 = arith.constant 0 : index
    %c2_106 = arith.constant 2 : index
    %c0_107 = arith.constant 0 : index
    %c0_108 = arith.constant 0 : index
    %484 = vector.load %arg2[%c0_105, %c2_106, %c0_107, %c0_108] : memref<1x20x8x128xf32, #tpu.memory_space<vmem>>, vector<1x1x8x128xf32>
    %485 = vector.shape_cast %484 : vector<1x1x8x128xf32> to vector<8x128xf32>
    %486 = vector.shape_cast %464 : vector<8x128xf32> to vector<1x1x8x128xf32>
    tpu.vector_store %arg2[%c0_105, %c2_106, %c0_107, %c0_108], %486 {strides = array<i32>} : memref<1x20x8x128xf32, #tpu.memory_space<vmem>>, vector<1x1x8x128xf32>,
    %c0_109 = arith.constant 0 : index
    %c3_110 = arith.constant 3 : index
    %c0_111 = arith.constant 0 : index
    %c0_112 = arith.constant 0 : index
    %487 = vector.load %arg2[%c0_109, %c3_110, %c0_111, %c0_112] : memref<1x20x8x128xf32, #tpu.memory_space<vmem>>, vector<1x1x8x128xf32>
    %488 = vector.shape_cast %487 : vector<1x1x8x128xf32> to vector<8x128xf32>
    %489 = vector.shape_cast %465 : vector<8x128xf32> to vector<1x1x8x128xf32>
    tpu.vector_store %arg2[%c0_109, %c3_110, %c0_111, %c0_112], %489 {strides = array<i32>} : memref<1x20x8x128xf32, #tpu.memory_space<vmem>>, vector<1x1x8x128xf32>,
    %c0_113 = arith.constant 0 : index
    %c4_114 = arith.constant 4 : index
    %c0_115 = arith.constant 0 : index
    %c0_116 = arith.constant 0 : index
    %490 = vector.load %arg2[%c0_113, %c4_114, %c0_115, %c0_116] : memref<1x20x8x128xf32, #tpu.memory_space<vmem>>, vector<1x1x8x128xf32>
    %491 = vector.shape_cast %490 : vector<1x1x8x128xf32> to vector<8x128xf32>
    %492 = vector.shape_cast %466 : vector<8x128xf32> to vector<1x1x8x128xf32>
    tpu.vector_store %arg2[%c0_113, %c4_114, %c0_115, %c0_116], %492 {strides = array<i32>} : memref<1x20x8x128xf32, #tpu.memory_space<vmem>>, vector<1x1x8x128xf32>,
    %c0_117 = arith.constant 0 : index
    %c5 = arith.constant 5 : index
    %c0_118 = arith.constant 0 : index
    %c0_119 = arith.constant 0 : index
    %493 = vector.load %arg2[%c0_117, %c5, %c0_118, %c0_119] : memref<1x20x8x128xf32, #tpu.memory_space<vmem>>, vector<1x1x8x128xf32>
    %494 = vector.shape_cast %493 : vector<1x1x8x128xf32> to vector<8x128xf32>
    %495 = vector.shape_cast %467 : vector<8x128xf32> to vector<1x1x8x128xf32>
    tpu.vector_store %arg2[%c0_117, %c5, %c0_118, %c0_119], %495 {strides = array<i32>} : memref<1x20x8x128xf32, #tpu.memory_space<vmem>>, vector<1x1x8x128xf32>,
    %c0_120 = arith.constant 0 : index
    %c6 = arith.constant 6 : index
    %c0_121 = arith.constant 0 : index
    %c0_122 = arith.constant 0 : index
    %496 = vector.load %arg2[%c0_120, %c6, %c0_121, %c0_122] : memref<1x20x8x128xf32, #tpu.memory_space<vmem>>, vector<1x1x8x128xf32>
    %497 = vector.shape_cast %496 : vector<1x1x8x128xf32> to vector<8x128xf32>
    %498 = vector.shape_cast %468 : vector<8x128xf32> to vector<1x1x8x128xf32>
    tpu.vector_store %arg2[%c0_120, %c6, %c0_121, %c0_122], %498 {strides = array<i32>} : memref<1x20x8x128xf32, #tpu.memory_space<vmem>>, vector<1x1x8x128xf32>,
    %c0_123 = arith.constant 0 : index
    %c7 = arith.constant 7 : index
    %c0_124 = arith.constant 0 : index
    %c0_125 = arith.constant 0 : index
    %499 = vector.load %arg2[%c0_123, %c7, %c0_124, %c0_125] : memref<1x20x8x128xf32, #tpu.memory_space<vmem>>, vector<1x1x8x128xf32>
    %500 = vector.shape_cast %499 : vector<1x1x8x128xf32> to vector<8x128xf32>
    %501 = vector.shape_cast %469 : vector<8x128xf32> to vector<1x1x8x128xf32>
    tpu.vector_store %arg2[%c0_123, %c7, %c0_124, %c0_125], %501 {strides = array<i32>} : memref<1x20x8x128xf32, #tpu.memory_space<vmem>>, vector<1x1x8x128xf32>,
    %c0_126 = arith.constant 0 : index
    %c8 = arith.constant 8 : index
    %c0_127 = arith.constant 0 : index
    %c0_128 = arith.constant 0 : index
    %502 = vector.load %arg2[%c0_126, %c8, %c0_127, %c0_128] : memref<1x20x8x128xf32, #tpu.memory_space<vmem>>, vector<1x1x8x128xf32>
    %503 = vector.shape_cast %502 : vector<1x1x8x128xf32> to vector<8x128xf32>
    %504 = vector.shape_cast %470 : vector<8x128xf32> to vector<1x1x8x128xf32>
    tpu.vector_store %arg2[%c0_126, %c8, %c0_127, %c0_128], %504 {strides = array<i32>} : memref<1x20x8x128xf32, #tpu.memory_space<vmem>>, vector<1x1x8x128xf32>,
    %c0_129 = arith.constant 0 : index
    %c9 = arith.constant 9 : index
    %c0_130 = arith.constant 0 : index
    %c0_131 = arith.constant 0 : index
    %505 = vector.load %arg2[%c0_129, %c9, %c0_130, %c0_131] : memref<1x20x8x128xf32, #tpu.memory_space<vmem>>, vector<1x1x8x128xf32>
    %506 = vector.shape_cast %505 : vector<1x1x8x128xf32> to vector<8x128xf32>
    %507 = vector.shape_cast %471 : vector<8x128xf32> to vector<1x1x8x128xf32>
    tpu.vector_store %arg2[%c0_129, %c9, %c0_130, %c0_131], %507 {strides = array<i32>} : memref<1x20x8x128xf32, #tpu.memory_space<vmem>>, vector<1x1x8x128xf32>,
    %c0_132 = arith.constant 0 : index
    %c10 = arith.constant 10 : index
    %c0_133 = arith.constant 0 : index
    %c0_134 = arith.constant 0 : index
    %508 = vector.load %arg2[%c0_132, %c10, %c0_133, %c0_134] : memref<1x20x8x128xf32, #tpu.memory_space<vmem>>, vector<1x1x8x128xf32>
    %509 = vector.shape_cast %508 : vector<1x1x8x128xf32> to vector<8x128xf32>
    %510 = vector.shape_cast %472 : vector<8x128xf32> to vector<1x1x8x128xf32>
    tpu.vector_store %arg2[%c0_132, %c10, %c0_133, %c0_134], %510 {strides = array<i32>} : memref<1x20x8x128xf32, #tpu.memory_space<vmem>>, vector<1x1x8x128xf32>,
    %c0_135 = arith.constant 0 : index
    %c11 = arith.constant 11 : index
    %c0_136 = arith.constant 0 : index
    %c0_137 = arith.constant 0 : index
    %511 = vector.load %arg2[%c0_135, %c11, %c0_136, %c0_137] : memref<1x20x8x128xf32, #tpu.memory_space<vmem>>, vector<1x1x8x128xf32>
    %512 = vector.shape_cast %511 : vector<1x1x8x128xf32> to vector<8x128xf32>
    %513 = vector.shape_cast %473 : vector<8x128xf32> to vector<1x1x8x128xf32>
    tpu.vector_store %arg2[%c0_135, %c11, %c0_136, %c0_137], %513 {strides = array<i32>} : memref<1x20x8x128xf32, #tpu.memory_space<vmem>>, vector<1x1x8x128xf32>,
    %c0_138 = arith.constant 0 : index
    %c12 = arith.constant 12 : index
    %c0_139 = arith.constant 0 : index
    %c0_140 = arith.constant 0 : index
    %514 = vector.load %arg2[%c0_138, %c12, %c0_139, %c0_140] : memref<1x20x8x128xf32, #tpu.memory_space<vmem>>, vector<1x1x8x128xf32>
    %515 = vector.shape_cast %514 : vector<1x1x8x128xf32> to vector<8x128xf32>
    %516 = vector.shape_cast %474 : vector<8x128xf32> to vector<1x1x8x128xf32>
    tpu.vector_store %arg2[%c0_138, %c12, %c0_139, %c0_140], %516 {strides = array<i32>} : memref<1x20x8x128xf32, #tpu.memory_space<vmem>>, vector<1x1x8x128xf32>,
    %c0_141 = arith.constant 0 : index
    %c13 = arith.constant 13 : index
    %c0_142 = arith.constant 0 : index
    %c0_143 = arith.constant 0 : index
    %517 = vector.load %arg2[%c0_141, %c13, %c0_142, %c0_143] : memref<1x20x8x128xf32, #tpu.memory_space<vmem>>, vector<1x1x8x128xf32>
    %518 = vector.shape_cast %517 : vector<1x1x8x128xf32> to vector<8x128xf32>
    %519 = vector.shape_cast %475 : vector<8x128xf32> to vector<1x1x8x128xf32>
    tpu.vector_store %arg2[%c0_141, %c13, %c0_142, %c0_143], %519 {strides = array<i32>} : memref<1x20x8x128xf32, #tpu.memory_space<vmem>>, vector<1x1x8x128xf32>,
    %c0_144 = arith.constant 0 : index
    %c14 = arith.constant 14 : index
    %c0_145 = arith.constant 0 : index
    %c0_146 = arith.constant 0 : index
    %520 = vector.load %arg2[%c0_144, %c14, %c0_145, %c0_146] : memref<1x20x8x128xf32, #tpu.memory_space<vmem>>, vector<1x1x8x128xf32>
    %521 = vector.shape_cast %520 : vector<1x1x8x128xf32> to vector<8x128xf32>
    %522 = vector.shape_cast %476 : vector<8x128xf32> to vector<1x1x8x128xf32>
    tpu.vector_store %arg2[%c0_144, %c14, %c0_145, %c0_146], %522 {strides = array<i32>} : memref<1x20x8x128xf32, #tpu.memory_space<vmem>>, vector<1x1x8x128xf32>,
    %c0_147 = arith.constant 0 : index
    %c15 = arith.constant 15 : index
    %c0_148 = arith.constant 0 : index
    %c0_149 = arith.constant 0 : index
    %523 = vector.load %arg2[%c0_147, %c15, %c0_148, %c0_149] : memref<1x20x8x128xf32, #tpu.memory_space<vmem>>, vector<1x1x8x128xf32>
    %524 = vector.shape_cast %523 : vector<1x1x8x128xf32> to vector<8x128xf32>
    %525 = vector.shape_cast %477 : vector<8x128xf32> to vector<1x1x8x128xf32>
    tpu.vector_store %arg2[%c0_147, %c15, %c0_148, %c0_149], %525 {strides = array<i32>} : memref<1x20x8x128xf32, #tpu.memory_space<vmem>>, vector<1x1x8x128xf32>,
    %c0_150 = arith.constant 0 : index
    %c16 = arith.constant 16 : index
    %c0_151 = arith.constant 0 : index
    %c0_152 = arith.constant 0 : index
    %526 = vector.load %arg2[%c0_150, %c16, %c0_151, %c0_152] : memref<1x20x8x128xf32, #tpu.memory_space<vmem>>, vector<1x1x8x128xf32>
    %527 = vector.shape_cast %526 : vector<1x1x8x128xf32> to vector<8x128xf32>
    %528 = vector.shape_cast %253 : vector<8x128xf32> to vector<1x1x8x128xf32>
    tpu.vector_store %arg2[%c0_150, %c16, %c0_151, %c0_152], %528 {strides = array<i32>} : memref<1x20x8x128xf32, #tpu.memory_space<vmem>>, vector<1x1x8x128xf32>,
    %c0_153 = arith.constant 0 : index
    %c17 = arith.constant 17 : index
    %c0_154 = arith.constant 0 : index
    %c0_155 = arith.constant 0 : index
    %529 = vector.load %arg2[%c0_153, %c17, %c0_154, %c0_155] : memref<1x20x8x128xf32, #tpu.memory_space<vmem>>, vector<1x1x8x128xf32>
    %530 = vector.shape_cast %529 : vector<1x1x8x128xf32> to vector<8x128xf32>
    %531 = vector.shape_cast %245 : vector<8x128xf32> to vector<1x1x8x128xf32>
    tpu.vector_store %arg2[%c0_153, %c17, %c0_154, %c0_155], %531 {strides = array<i32>} : memref<1x20x8x128xf32, #tpu.memory_space<vmem>>, vector<1x1x8x128xf32>,
    %c0_156 = arith.constant 0 : index
    %c18 = arith.constant 18 : index
    %c0_157 = arith.constant 0 : index
    %c0_158 = arith.constant 0 : index
    %532 = vector.load %arg2[%c0_156, %c18, %c0_157, %c0_158] : memref<1x20x8x128xf32, #tpu.memory_space<vmem>>, vector<1x1x8x128xf32>
    %533 = vector.shape_cast %532 : vector<1x1x8x128xf32> to vector<8x128xf32>
    %534 = vector.shape_cast %248 : vector<8x128xf32> to vector<1x1x8x128xf32>
    tpu.vector_store %arg2[%c0_156, %c18, %c0_157, %c0_158], %534 {strides = array<i32>} : memref<1x20x8x128xf32, #tpu.memory_space<vmem>>, vector<1x1x8x128xf32>,
    %c0_159 = arith.constant 0 : index
    %c19 = arith.constant 19 : index
    %c0_160 = arith.constant 0 : index
    %c0_161 = arith.constant 0 : index
    %535 = vector.load %arg2[%c0_159, %c19, %c0_160, %c0_161] : memref<1x20x8x128xf32, #tpu.memory_space<vmem>>, vector<1x1x8x128xf32>
    %536 = vector.shape_cast %535 : vector<1x1x8x128xf32> to vector<8x128xf32>
    %537 = vector.shape_cast %251 : vector<8x128xf32> to vector<1x1x8x128xf32>
    tpu.vector_store %arg2[%c0_159, %c19, %c0_160, %c0_161], %537 {strides = array<i32>} : memref<1x20x8x128xf32, #tpu.memory_space<vmem>>, vector<1x1x8x128xf32>,
    return
  }
  func.func @transform_0(%arg0: i32) -> (i32, i32, i32, i32) {
    %c0_i32 = arith.constant 0 : i32
    %c0_i32_0 = arith.constant 0 : i32
    %c0_i32_1 = arith.constant 0 : i32
    %c0_i32_2 = arith.constant 0 : i32
    return %arg0, %c0_i32, %c0_i32_0, %c0_i32_1 : i32, i32, i32, i32
  }
  func.func @transform_1(%arg0: i32) -> (i32, i32, i32, i32) {
    %c0_i32 = arith.constant 0 : i32
    %c0_i32_0 = arith.constant 0 : i32
    %c0_i32_1 = arith.constant 0 : i32
    %c0_i32_2 = arith.constant 0 : i32
    return %arg0, %c0_i32, %c0_i32_0, %c0_i32_1 : i32, i32, i32, i32
  }
}

</mosaic_0001>

<llo_original>
// kernel: _ekf_forward_impl.1
$region0: #{_ekf_forward_impl.1}
  #allocation0 [shape = 'u32[]', space=smem, size = 0x4, offset = 0x4, fixed_abs, tag = 'smem constant byte address 0x4 - core index']
  #allocation1 [shape = 'u32[144,128]{1,0:T(1,128)}', space=vmem, size = 0x12000, scoped, tag = 'internal scratch']
  %s0 = inlined_call_operand.vmem [shape: f32[2,5,8,128], index: 0, kind: input, shape index: {}]
  %s1 = inlined_call_operand.vmem [shape: f32[2,20,8,128], index: 1, kind: output, shape index: {}]
  %s2 = sld [smem:[#allocation0]]
  $region37: #{_ekf_forward_impl.1} parent=0
    _
  %s4 = ssub.s32 1, %s2
  %s5 = scalar_select 0, %s4, %s2
  loop: start=0, step=1, limit=4
  $region2: #{_ekf_forward_impl.1} parent=0 // loop_pre_header
    _
  $region3: #{_ekf_forward_impl.1} parent=0 // loop_header
    %s7 = sphi 0, %s11
    %p8 = scmp.ge.s32.totalorder %s7, 4
    %s17 = sphi 0, %s19
    %s20 = sphi 0, %s17
    %s21 = sphi 0, %s20
    %s37 = sphi 0, %s21
    %s43 = sphi 0, %s45
    %s46 = sphi 0, %s43
    %s47 = sphi 0, %s46
    %s63 = sphi 0, %s47
  $region4: #{_ekf_forward_impl.1} parent=0 // loop_header_branch
    %10 = sbr.rel (%p8) target = $region8
  $region5: #{_ekf_forward_impl.1} parent=0 // loop_body
    %s12 = ssub.s32 %s7, 1
    %s13 = ssub.s32 %s7, 2
    %s14 = sadd.s32 %s7, 1
    %s15 = ssub.s32 %s7, %s14
    %p16 = scmp.eq.s32.totalorder %s15, 0
    %s18 = sadd.s32 %s17, 1
    %s19 = scalar_select %p16, %s17, %s18
    %p22 = pneg %p16
    %p23 = scmp.eq.s32.totalorder %s7, 1
    %p24 = por %p22, %p23
    %p25 = scmp.ne.s32.totalorder %s17, %s20
    %p26 = scmp.eq.s32.totalorder %s7, 0
    %p27 = por %p25, %p26
    %p28 = scmp.ne.s32.totalorder %s17, %s20
    %p29 = scmp.eq.s32.totalorder %s12, 1
    %p30 = por %p28, %p29
    %p31 = scmp.ne.s32.totalorder %s20, %s21
    %p32 = scmp.eq.s32.totalorder %s12, 0
    %p33 = por %p31, %p32
    %p34 = scmp.ne.s32.totalorder %s20, %s21
    %p35 = scmp.eq.s32.totalorder %s13, 1
    %p36 = por %p34, %p35
    %p38 = scmp.ne.s32.totalorder %s21, %s37
    %p39 = scmp.eq.s32.totalorder %s13, 0
    %p40 = por %p38, %p39
    %s41 = ssub.s32 %s7, %s14
    %p42 = scmp.eq.s32.totalorder %s41, 0
    %s44 = sadd.s32 %s43, 1
    %s45 = scalar_select %p42, %s43, %s44
    %p48 = pneg %p42
    %p49 = scmp.eq.s32.totalorder %s7, 1
    %p50 = por %p48, %p49
    %p51 = scmp.ne.s32.totalorder %s43, %s46
    %p52 = scmp.eq.s32.totalorder %s7, 0
    %p53 = por %p51, %p52
    %p54 = scmp.ne.s32.totalorder %s43, %s46
    %p55 = scmp.eq.s32.totalorder %s12, 1
    %p56 = por %p54, %p55
    %p57 = scmp.ne.s32.totalorder %s46, %s47
    %p58 = scmp.eq.s32.totalorder %s12, 0
    %p59 = por %p57, %p58
    %p60 = scmp.ne.s32.totalorder %s46, %s47
    %p61 = scmp.eq.s32.totalorder %s13, 1
    %p62 = por %p60, %p61
    %p64 = scmp.ne.s32.totalorder %s47, %s63
    %p65 = scmp.eq.s32.totalorder %s13, 0
    %p66 = por %p64, %p65
    %p67 = scmp.le.s32.totalorder 1, %s7
    %p68 = scmp.lt.s32.totalorder %s7, 3
    %p69 = pnand %p67, %p68
    %p70 = pneg %p69
    // Predicated region
    $region9: #{_ekf_forward_impl.1} parent=5 // pred_check
      _
    $region10: #{_ekf_forward_impl.1} parent=5 // pred_check_branch
      %72 = sbr.rel (%p69) target = $region12
    $region11: #{_ekf_forward_impl.1} parent=5 // pred_region
      %s73 = ssub.s32 %s7, 1
    $region12: #{_ekf_forward_impl.1} parent=5 // pred_fallthru
      _
    %p74 = scmp.lt.s32.totalorder %s7, 2
    // Predicated region
    $region13: #{_ekf_forward_impl.1} parent=5 // pred_check
      %p75 = pneg %p74
    $region14: #{_ekf_forward_impl.1} parent=5 // pred_check_branch
      %77 = sbr.rel (%p75) target = $region16
    $region15: #{_ekf_forward_impl.1} parent=5 // pred_region
      // Predicated region
      $region17: #{_ekf_forward_impl.1} parent=15 // pred_check
        %p78 = pneg %p27
      $region18: #{_ekf_forward_impl.1} parent=15 // pred_check_branch
        %80 = sbr.rel (%p78) target = $region20
      $region19: #{_ekf_forward_impl.1} parent=15 // pred_region
        %p81 = scmp.lt.s32.totalorder %s7, 1
        %s82 = scalar_select %p81, %s7, 1
        %s83 = smul.addr %s82, 5
        %s84 = smul.addr %s83, 8
        %s85 = scalar_lea.vmem %s0, %s84
      $region20: #{_ekf_forward_impl.1} parent=15 // pred_fallthru
        _
    $region16: #{_ekf_forward_impl.1} parent=5 // pred_fallthru
      _
    %p86 = scmp.le.s32.totalorder 1, %s7
    %p87 = scmp.lt.s32.totalorder %s7, 3
    %p88 = pnand %p86, %p87
    %p89 = pneg %p88
    // Predicated region
    $region21: #{_ekf_forward_impl.1} parent=5 // pred_check
      _
    $region22: #{_ekf_forward_impl.1} parent=5 // pred_check_branch
      %91 = sbr.rel (%p88) target = $region24
    $region23: #{_ekf_forward_impl.1} parent=5 // pred_region
      %s92 = ssub.s32 %s7, 1
      %p93 = scmp.lt.s32.totalorder %s12, 1
      %s94 = scalar_select %p93, %s12, 1
      %s95 = smul.addr %s94, 5
      %s96 = smul.addr %s95, 8
      %s97 = scalar_lea.vmem %s0, %s96
      %p98 = pneg %p33
      %p99 = pneg %p30
      %p100 = pneg %p59
      %p101 = pneg %p56
      %p102 = scmp.lt.s32.totalorder %s12, 1
      %s103 = scalar_select %p102, %s12, 1
      %s104 = smul.addr %s103, 20
      %s105 = smul.addr %s104, 8
      %s106 = scalar_lea.vmem %s1, %s105
      %p107 = scmp.lt.s32.totalorder %s12, 1
      %s108 = scalar_select %p107, %s12, 1
      %s109 = smul.addr %s108, 5
      %s110 = smul.addr %s109, 8
      %s111 = scalar_lea.vmem %s0, %s110
      %p112 = scmp.lt.s32.totalorder %s12, 1
      %s113 = scalar_select %p112, %s12, 1
      %s114 = smul.addr %s113, 20
      %s115 = smul.addr %s114, 8
      %s116 = scalar_lea.vmem %s1, %s115
      %v117 = vld [vmem:[%s111] sm:$0xff]
      %s118 = scalar_lea.vmem %s111, 8
      %v119 = vld [vmem:[%s118] sm:$0xff]
      %s120 = scalar_lea.vmem %s111, 16
      %v121 = vld [vmem:[%s120] sm:$0xff]
      %s122 = scalar_lea.vmem %s111, 24
      %v123 = vld [vmem:[%s122] sm:$0xff]
      %s124 = scalar_lea.vmem %s111, 32
      %v125 = vld [vmem:[%s124] sm:$0xff]
      %v126 = vmul.f32 %v117, 0.0025
      %v127 = vmul.f32 %v119, 0.0025
      %v128 = vmul.f32 %v121, 0.0025
      %v129 = vsub.f32 0.0, %v126
      %v130 = vsub.f32 0.0, %v127
      %v131 = vsub.f32 0.0, %v128
      %v132 = vmul.f32 %v129, 4.35e-07
      %v133 = vmul.f32 %v130, 4.35e-07
      %v134 = vmul.f32 %v131, 4.35e-07
      %v135 = vmul.f32 %v126, 4.35e-07
      %v136 = vmul.f32 %v128, 4.35e-07
      %v137 = vmul.f32 %v127, 4.35e-07
      %v138 = vmul.f32 %v132, %v129
      %v139 = vadd.f32 %v138, 4.35e-07
      %v140 = vmul.f32 %v133, %v130
      %v141 = vadd.f32 %v139, %v140
      %v142 = vmul.f32 %v134, %v131
      %v143 = vadd.f32 %v141, %v142
      %v144 = vadd.f32 %v135, %v132
      %v145 = vmul.f32 %v133, %v128
      %v146 = vadd.f32 %v144, %v145
      %v147 = vmul.f32 %v134, %v130
      %v148 = vadd.f32 %v146, %v147
      %v149 = vmul.f32 %v132, %v131
      %v150 = vadd.f32 %v137, %v149
      %v151 = vadd.f32 %v150, %v133
      %v152 = vmul.f32 %v134, %v126
      %v153 = vadd.f32 %v151, %v152
      %v154 = vmul.f32 %v132, %v127
      %v155 = vadd.f32 %v136, %v154
      %v156 = vmul.f32 %v133, %v129
      %v157 = vadd.f32 %v155, %v156
      %v158 = vadd.f32 %v157, %v134
      %v159 = vmul.f32 %v136, %v130
      %v160 = vadd.f32 %v144, %v159
      %v161 = vmul.f32 %v133, %v131
      %v162 = vadd.f32 %v160, %v161
      %v163 = vmul.f32 %v135, %v126
      %v164 = vadd.f32 %v163, 4.35e-07
      %v165 = vmul.f32 %v136, %v128
      %v166 = vadd.f32 %v164, %v165
      %v167 = vadd.f32 %v166, %v140
      %v168 = vmul.f32 %v135, %v127
      %v169 = vadd.f32 %v168, %v134
      %v170 = vadd.f32 %v169, %v136
      %v171 = vmul.f32 %v133, %v126
      %v172 = vadd.f32 %v170, %v171
      %v173 = vmul.f32 %v135, %v128
      %v174 = vadd.f32 %v173, %v137
      %v175 = vmul.f32 %v136, %v129
      %v176 = vadd.f32 %v174, %v175
      %v177 = vadd.f32 %v176, %v133
      %v178 = vmul.f32 %v134, %v129
      %v179 = vadd.f32 %v137, %v178
      %v180 = vadd.f32 %v179, %v133
      %v181 = vmul.f32 %v135, %v131
      %v182 = vadd.f32 %v180, %v181
      %v183 = vmul.f32 %v137, %v126
      %v184 = vadd.f32 %v183, %v134
      %v185 = vadd.f32 %v184, %v136
      %v186 = vmul.f32 %v135, %v130
      %v187 = vadd.f32 %v185, %v186
      %v188 = vmul.f32 %v137, %v127
      %v189 = vadd.f32 %v188, %v142
      %v190 = vadd.f32 %v189, 4.35e-07
      %v191 = vadd.f32 %v190, %v163
      %v192 = vmul.f32 %v137, %v128
      %v193 = vmul.f32 %v134, %v127
      %v194 = vadd.f32 %v192, %v193
      %v195 = vadd.f32 %v194, %v132
      %v196 = vadd.f32 %v195, %v135
      %v197 = vmul.f32 %v137, %v129
      %v198 = vadd.f32 %v136, %v197
      %v199 = vmul.f32 %v132, %v130
      %v200 = vadd.f32 %v198, %v199
      %v201 = vadd.f32 %v200, %v134
      %v202 = vmul.f32 %v136, %v126
      %v203 = vadd.f32 %v202, %v137
      %v204 = vmul.f32 %v132, %v128
      %v205 = vadd.f32 %v203, %v204
      %v206 = vadd.f32 %v205, %v133
      %v207 = vmul.f32 %v136, %v127
      %v208 = vmul.f32 %v137, %v131
      %v209 = vadd.f32 %v207, %v208
      %v210 = vadd.f32 %v209, %v132
      %v211 = vadd.f32 %v210, %v135
      %v212 = vadd.f32 %v165, %v188
      %v213 = vadd.f32 %v212, %v138
      %v214 = vadd.f32 %v213, 4.35e-07
      %v215 = vadd.f32 %v143, 4.35e-07
      %v216 = vadd.f32 %v167, 4.35e-07
      %v217 = vadd.f32 %v191, 4.35e-07
      %v218 = vadd.f32 %v214, 4.35e-07
      %v219 = vmul.f32 %v153, 2.0
      %v220 = vmul.f32 %v148, 2.0
      %v221 = vmul.f32 %v172, 2.0
      %v222 = vmul.f32 %v216, 2.0
      %v223 = vmul.f32 %v217, 2.0
      %v224 = vmul.f32 %v187, 2.0
      %v225 = vmul.f32 %v211, 2.0
      %v226 = vmul.f32 %v206, 2.0
      %v227 = vmul.f32 %v223, 2.0
      %v228 = vmul.f32 %v224, 2.0
      %v229 = vmul.f32 %v221, 2.0
      %v230 = vmul.f32 %v222, 2.0
      %v231 = vadd.f32 %v227, 2.5e-05
      %v232 = vadd.f32 %v230, 2.5e-05
      %v233 = vmul.f32 %v231, %v232
      %v234 = vmul.f32 %v228, %v229
      %v235 = vsub.f32 %v233, %v234
      %v236 = vrcp.pop %v235
      %v237 = vmul.f32 %v235, %v236
      %v238 = vsub.f32 2.0, %v237
      %v239 = vmul.f32 %v236, %v238
      %v240 = vmul.f32 %v232, %v239
      %v241 = vmul.f32 %v228, %v239
      %v242 = vsub.f32 0.0, %v241
      %v243 = vmul.f32 %v229, %v239
      %v244 = vsub.f32 0.0, %v243
      %v245 = vmul.f32 %v231, %v239
      %v246 = vmul.f32 %v219, %v240
      %v247 = vmul.f32 %v220, %v244
      %v248 = vadd.f32 %v246, %v247
      %v249 = vmul.f32 %v219, %v242
      %v250 = vmul.f32 %v220, %v245
      %v251 = vadd.f32 %v249, %v250
      %v252 = vmul.f32 %v221, %v240
      %v253 = vmul.f32 %v222, %v244
      %v254 = vadd.f32 %v252, %v253
      %v255 = vmul.f32 %v221, %v242
      %v256 = vmul.f32 %v222, %v245
      %v257 = vadd.f32 %v255, %v256
      %v258 = vmul.f32 %v223, %v240
      %v259 = vmul.f32 %v224, %v244
      %v260 = vadd.f32 %v258, %v259
      %v261 = vmul.f32 %v223, %v242
      %v262 = vmul.f32 %v224, %v245
      %v263 = vadd.f32 %v261, %v262
      %v264 = vmul.f32 %v225, %v240
      %v265 = vmul.f32 %v226, %v244
      %v266 = vadd.f32 %v264, %v265
      %v267 = vmul.f32 %v225, %v242
      %v268 = vmul.f32 %v226, %v245
      %v269 = vadd.f32 %v267, %v268
      %v270 = vmul.f32 %v248, %v123
      %v271 = vmul.f32 %v251, %v125
      %v272 = vadd.f32 %v270, %v271
      %v273 = vmul.f32 %v254, %v123
      %v274 = vmul.f32 %v257, %v125
      %v275 = vadd.f32 %v273, %v274
      %v276 = vmul.f32 %v260, %v123
      %v277 = vmul.f32 %v263, %v125
      %v278 = vadd.f32 %v276, %v277
      %v279 = vmul.f32 %v266, %v123
      %v280 = vmul.f32 %v269, %v125
      %v281 = vadd.f32 %v279, %v280
      %v282 = vadd.f32 %v272, 1.0
      %v283 = vmul.f32 %v251, 2.0
      %v284 = vmul.f32 %v248, 2.0
      %v285 = vmul.f32 %v257, 2.0
      %v286 = vmul.f32 %v254, 2.0
      %v287 = vmul.f32 %v263, 2.0
      %v288 = vmul.f32 %v260, 2.0
      %v289 = vmul.f32 %v269, 2.0
      %v290 = vmul.f32 %v266, 2.0
      %v291 = vsub.f32 0.0, %v283
      %v292 = vsub.f32 0.0, %v284
      %v293 = vsub.f32 1.0, %v285
      %v294 = vsub.f32 0.0, %v286
      %v295 = vsub.f32 0.0, %v287
      %v296 = vsub.f32 1.0, %v288
      %v297 = vsub.f32 0.0, %v289
      %v298 = vsub.f32 0.0, %v290
      %v299 = vmul.f32 %v291, %v162
      %v300 = vadd.f32 %v215, %v299
      %v301 = vmul.f32 %v292, %v182
      %v302 = vadd.f32 %v300, %v301
      %v303 = vmul.f32 %v291, %v216
      %v304 = vadd.f32 %v148, %v303
      %v305 = vmul.f32 %v292, %v187
      %v306 = vadd.f32 %v304, %v305
      %v307 = vmul.f32 %v291, %v172
      %v308 = vadd.f32 %v153, %v307
      %v309 = vmul.f32 %v292, %v217
      %v310 = vadd.f32 %v308, %v309
      %v311 = vmul.f32 %v291, %v177
      %v312 = vadd.f32 %v158, %v311
      %v313 = vmul.f32 %v292, %v196
      %v314 = vadd.f32 %v312, %v313
      %v315 = vmul.f32 %v293, %v162
      %v316 = vmul.f32 %v294, %v182
      %v317 = vadd.f32 %v315, %v316
      %v318 = vmul.f32 %v293, %v216
      %v319 = vmul.f32 %v294, %v187
      %v320 = vadd.f32 %v318, %v319
      %v321 = vmul.f32 %v293, %v172
      %v322 = vmul.f32 %v294, %v217
      %v323 = vadd.f32 %v321, %v322
      %v324 = vmul.f32 %v293, %v177
      %v325 = vmul.f32 %v294, %v196
      %v326 = vadd.f32 %v324, %v325
      %v327 = vmul.f32 %v295, %v162
      %v328 = vmul.f32 %v296, %v182
      %v329 = vadd.f32 %v327, %v328
      %v330 = vmul.f32 %v295, %v216
      %v331 = vmul.f32 %v296, %v187
      %v332 = vadd.f32 %v330, %v331
      %v333 = vmul.f32 %v295, %v172
      %v334 = vmul.f32 %v296, %v217
      %v335 = vadd.f32 %v333, %v334
      %v336 = vmul.f32 %v295, %v177
      %v337 = vmul.f32 %v296, %v196
      %v338 = vadd.f32 %v336, %v337
      %v339 = vmul.f32 %v297, %v162
      %v340 = vmul.f32 %v298, %v182
      %v341 = vadd.f32 %v339, %v340
      %v342 = vadd.f32 %v341, %v201
      %v343 = vmul.f32 %v297, %v216
      %v344 = vmul.f32 %v298, %v187
      %v345 = vadd.f32 %v343, %v344
      %v346 = vadd.f32 %v345, %v206
      %v347 = vmul.f32 %v297, %v172
      %v348 = vmul.f32 %v298, %v217
      %v349 = vadd.f32 %v347, %v348
      %v350 = vadd.f32 %v349, %v211
      %v351 = vmul.f32 %v297, %v177
      %v352 = vmul.f32 %v298, %v196
      %v353 = vadd.f32 %v351, %v352
      %v354 = vadd.f32 %v353, %v218
      %v355 = vmul.f32 %v306, %v291
      %v356 = vadd.f32 %v302, %v355
      %v357 = vmul.f32 %v310, %v292
      %v358 = vadd.f32 %v356, %v357
      %v359 = vmul.f32 %v306, %v293
      %v360 = vmul.f32 %v310, %v294
      %v361 = vadd.f32 %v359, %v360
      %v362 = vmul.f32 %v306, %v295
      %v363 = vmul.f32 %v310, %v296
      %v364 = vadd.f32 %v362, %v363
      %v365 = vmul.f32 %v306, %v297
      %v366 = vmul.f32 %v310, %v298
      %v367 = vadd.f32 %v365, %v366
      %v368 = vadd.f32 %v367, %v314
      %v369 = vmul.f32 %v320, %v291
      %v370 = vadd.f32 %v317, %v369
      %v371 = vmul.f32 %v323, %v292
      %v372 = vadd.f32 %v370, %v371
      %v373 = vmul.f32 %v320, %v293
      %v374 = vmul.f32 %v323, %v294
      %v375 = vadd.f32 %v373, %v374
      %v376 = vmul.f32 %v320, %v295
      %v377 = vmul.f32 %v323, %v296
      %v378 = vadd.f32 %v376, %v377
      %v379 = vmul.f32 %v320, %v297
      %v380 = vmul.f32 %v323, %v298
      %v381 = vadd.f32 %v379, %v380
      %v382 = vadd.f32 %v381, %v326
      %v383 = vmul.f32 %v332, %v291
      %v384 = vadd.f32 %v329, %v383
      %v385 = vmul.f32 %v335, %v292
      %v386 = vadd.f32 %v384, %v385
      %v387 = vmul.f32 %v332, %v293
      %v388 = vmul.f32 %v335, %v294
      %v389 = vadd.f32 %v387, %v388
      %v390 = vmul.f32 %v332, %v295
      %v391 = vmul.f32 %v335, %v296
      %v392 = vadd.f32 %v390, %v391
      %v393 = vmul.f32 %v332, %v297
      %v394 = vmul.f32 %v335, %v298
      %v395 = vadd.f32 %v393, %v394
      %v396 = vadd.f32 %v395, %v338
      %v397 = vmul.f32 %v346, %v291
      %v398 = vadd.f32 %v342, %v397
      %v399 = vmul.f32 %v350, %v292
      %v400 = vadd.f32 %v398, %v399
      %v401 = vmul.f32 %v346, %v293
      %v402 = vmul.f32 %v350, %v294
      %v403 = vadd.f32 %v401, %v402
      %v404 = vmul.f32 %v346, %v295
      %v405 = vmul.f32 %v350, %v296
      %v406 = vadd.f32 %v404, %v405
      %v407 = vmul.f32 %v346, %v297
      %v408 = vmul.f32 %v350, %v298
      %v409 = vadd.f32 %v407, %v408
      %v410 = vadd.f32 %v409, %v354
      %v411 = vmul.f32 %v248, 2.5e-05
      %v412 = vmul.f32 %v251, 2.5e-05
      %v413 = vmul.f32 %v254, 2.5e-05
      %v414 = vmul.f32 %v257, 2.5e-05
      %v415 = vmul.f32 %v260, 2.5e-05
      %v416 = vmul.f32 %v263, 2.5e-05
      %v417 = vmul.f32 %v266, 2.5e-05
      %v418 = vmul.f32 %v269, 2.5e-05
      %v419 = vmul.f32 %v411, %v248
      %v420 = vmul.f32 %v412, %v251
      %v421 = vadd.f32 %v419, %v420
      %v422 = vmul.f32 %v411, %v254
      %v423 = vmul.f32 %v412, %v257
      %v424 = vadd.f32 %v422, %v423
      %v425 = vmul.f32 %v411, %v260
      %v426 = vmul.f32 %v412, %v263
      %v427 = vadd.f32 %v425, %v426
      %v428 = vmul.f32 %v411, %v266
      %v429 = vmul.f32 %v412, %v269
      %v430 = vadd.f32 %v428, %v429
      %v431 = vmul.f32 %v413, %v248
      %v432 = vmul.f32 %v414, %v251
      %v433 = vadd.f32 %v431, %v432
      %v434 = vmul.f32 %v413, %v254
      %v435 = vmul.f32 %v414, %v257
      %v436 = vadd.f32 %v434, %v435
      %v437 = vmul.f32 %v413, %v260
      %v438 = vmul.f32 %v414, %v263
      %v439 = vadd.f32 %v437, %v438
      %v440 = vmul.f32 %v413, %v266
      %v441 = vmul.f32 %v414, %v269
      %v442 = vadd.f32 %v440, %v441
      %v443 = vmul.f32 %v415, %v248
      %v444 = vmul.f32 %v416, %v251
      %v445 = vadd.f32 %v443, %v444
      %v446 = vmul.f32 %v415, %v254
      %v447 = vmul.f32 %v416, %v257
      %v448 = vadd.f32 %v446, %v447
      %v449 = vmul.f32 %v415, %v260
      %v450 = vmul.f32 %v416, %v263
      %v451 = vadd.f32 %v449, %v450
      %v452 = vmul.f32 %v415, %v266
      %v453 = vmul.f32 %v416, %v269
      %v454 = vadd.f32 %v452, %v453
      %v455 = vmul.f32 %v417, %v248
      %v456 = vmul.f32 %v418, %v251
      %v457 = vadd.f32 %v455, %v456
      %v458 = vmul.f32 %v417, %v254
      %v459 = vmul.f32 %v418, %v257
      %v460 = vadd.f32 %v458, %v459
      %v461 = vmul.f32 %v417, %v260
      %v462 = vmul.f32 %v418, %v263
      %v463 = vadd.f32 %v461, %v462
      %v464 = vmul.f32 %v417, %v266
      %v465 = vmul.f32 %v418, %v269
      %v466 = vadd.f32 %v464, %v465
      %v467 = vadd.f32 %v358, %v421
      %v468 = vadd.f32 %v361, %v424
      %v469 = vadd.f32 %v364, %v427
      %v470 = vadd.f32 %v368, %v430
      %v471 = vadd.f32 %v372, %v433
      %v472 = vadd.f32 %v375, %v436
      %v473 = vadd.f32 %v378, %v439
      %v474 = vadd.f32 %v382, %v442
      %v475 = vadd.f32 %v386, %v445
      %v476 = vadd.f32 %v389, %v448
      %v477 = vadd.f32 %v392, %v451
      %v478 = vadd.f32 %v396, %v454
      %v479 = vadd.f32 %v400, %v457
      %v480 = vadd.f32 %v403, %v460
      %v481 = vadd.f32 %v406, %v463
      %v482 = vadd.f32 %v410, %v466
      %483 = vst [vmem:[%s116] sm:$0xff] %v467
      %s484 = scalar_lea.vmem %s116, 8
      %485 = vst [vmem:[%s484] sm:$0xff] %v468
      %s486 = scalar_lea.vmem %s116, 16
      %487 = vst [vmem:[%s486] sm:$0xff] %v469
      %s488 = scalar_lea.vmem %s116, 24
      %489 = vst [vmem:[%s488] sm:$0xff] %v470
      %s490 = scalar_lea.vmem %s116, 32
      %491 = vst [vmem:[%s490] sm:$0xff] %v471
      %s492 = scalar_lea.vmem %s116, 40
      %493 = vst [vmem:[%s492] sm:$0xff] %v472
      %s494 = scalar_lea.vmem %s116, 48
      %495 = vst [vmem:[%s494] sm:$0xff] %v473
      %s496 = scalar_lea.vmem %s116, 56
      %497 = vst [vmem:[%s496] sm:$0xff] %v474
      %s498 = scalar_lea.vmem %s116, 64
      %499 = vst [vmem:[%s498] sm:$0xff] %v475
      %s500 = scalar_lea.vmem %s116, 72
      %501 = vst [vmem:[%s500] sm:$0xff] %v476
      %s502 = scalar_lea.vmem %s116, 80
      %503 = vst [vmem:[%s502] sm:$0xff] %v477
      %s504 = scalar_lea.vmem %s116, 88
      %505 = vst [vmem:[%s504] sm:$0xff] %v478
      %s506 = scalar_lea.vmem %s116, 96
      %507 = vst [vmem:[%s506] sm:$0xff] %v479
      %s508 = scalar_lea.vmem %s116, 104
      %509 = vst [vmem:[%s508] sm:$0xff] %v480
      %s510 = scalar_lea.vmem %s116, 112
      %511 = vst [vmem:[%s510] sm:$0xff] %v481
      %s512 = scalar_lea.vmem %s116, 120
      %513 = vst [vmem:[%s512] sm:$0xff] %v482
      %s514 = scalar_lea.vmem %s116, 128
      %515 = vst [vmem:[%s514] sm:$0xff] %v282
      %s516 = scalar_lea.vmem %s116, 136
      %517 = vst [vmem:[%s516] sm:$0xff] %v275
      %s518 = scalar_lea.vmem %s116, 144
      %519 = vst [vmem:[%s518] sm:$0xff] %v278
      %s520 = scalar_lea.vmem %s116, 152
      %521 = vst [vmem:[%s520] sm:$0xff] %v281
      %p522 = scmp.lt.s32.totalorder %s12, 1
      %s523 = scalar_select %p522, %s12, 1
      %s524 = smul.addr %s523, 20
      %s525 = smul.addr %s524, 8
      %s526 = scalar_lea.vmem %s1, %s525
      // Predicated region
      $region25: #{_ekf_forward_impl.1} parent=23 // pred_check
        %p527 = pneg %p56
      $region26: #{_ekf_forward_impl.1} parent=23 // pred_check_branch
        %529 = sbr.rel (%p527) target = $region28
      $region27: #{_ekf_forward_impl.1} parent=23 // pred_region
        _
      $region28: #{_ekf_forward_impl.1} parent=23 // pred_fallthru
        _
    $region24: #{_ekf_forward_impl.1} parent=5 // pred_fallthru
      _
    %p530 = scmp.le.s32.totalorder 2, %s7
    // Predicated region
    $region29: #{_ekf_forward_impl.1} parent=5 // pred_check
      %p531 = pneg %p530
    $region30: #{_ekf_forward_impl.1} parent=5 // pred_check_branch
      %533 = sbr.rel (%p531) target = $region32
    $region31: #{_ekf_forward_impl.1} parent=5 // pred_region
      %s534 = ssub.s32 %s7, 2
      // Predicated region
      $region33: #{_ekf_forward_impl.1} parent=31 // pred_check
        %p535 = pneg %p62
      $region34: #{_ekf_forward_impl.1} parent=31 // pred_check_branch
        %537 = sbr.rel (%p535) target = $region36
      $region35: #{_ekf_forward_impl.1} parent=31 // pred_region
        %p538 = scmp.lt.s32.totalorder %s13, 1
        %s539 = scalar_select %p538, %s13, 1
        %s540 = smul.addr %s539, 20
        %s541 = smul.addr %s540, 8
        %s542 = scalar_lea.vmem %s1, %s541
      $region36: #{_ekf_forward_impl.1} parent=31 // pred_fallthru
        _
    $region32: #{_ekf_forward_impl.1} parent=5 // pred_fallthru
      _
  $region6: #{_ekf_forward_impl.1} parent=0 // loop_footer
    %s11 = sadd.s32 1, %s7
  $region7: #{_ekf_forward_impl.1} parent=0 // loop_footer_branch
    %6 = sbr.rel target = $region3
  $region8: #{_ekf_forward_impl.1} parent=0 // loop_exit
    _

</llo_original>
